<compile_context>
chip_gen: v6e
topology: v6e:2x2x1
jax: 0.10.0
libtpu: 0.0.40
codegen_flags: <defaults>
</compile_context>

<pallas_src>
import functools

import jax
import jax.numpy as jnp
from jax.experimental import pallas as pl
from jax.experimental.pallas import tpu as pltpu


def _round_up(n, m):
    return ((n + m - 1) // m) * m


def _char_decoder_kernel(x_ref, wih_ref, whh_ref, b_ref, wout_ref, bout_ref,
                         h0_ref, c0_ref,
                         scores_ref, hT_ref, cT_ref,
                         gin_ref, hseq_ref,
                         *, lt, bb, seq_len, mask_tail):
    """One time-block of the LSTM + deferred output projection.

    Grid: (num_time_blocks,), "arbitrary" (serial recurrence over blocks).

    x_ref      : (Lt*Bp, Ep)   bf16  embedded chars for this time block
    wih_ref    : (Ep, 4*Hp)    bf16  input->gates weight (padded, pre-transposed)
    whh_ref    : (Hp, 4*Hp)    bf16  hidden->gates weight (padded, pre-transposed)
    b_ref      : (1, 4*Hp)     f32   b_ih + b_hh (padded)
    wout_ref   : (Hp, Vp)      bf16  output projection weight (padded, pre-transposed)
    bout_ref   : (1, Vp)       f32   output projection bias (padded)
    h0_ref/c0_ref : (Bp, Hp)   f32   initial LSTM state (padded)
    scores_ref : (Lt*Bp, Vp)   f32   scores for this time block
    hT_ref/cT_ref : (Bp, Hp)   f32   LSTM state; resident across time blocks
                                     (same output block every grid step), also
                                     the final dec_hidden
    gin_ref    : (Lt*Bp, 4*Hp) f32   scratch: batched input-projection gates
    hseq_ref   : (Lt*Bp, Hp)   bf16  scratch: per-step hidden states
    """
    Hp = hT_ref.shape[-1]
    tb = pl.program_id(0)

    # (0) Initialize the resident state from h0/c0 on the first time block.
    @pl.when(tb == 0)
    def _():
        hT_ref[...] = h0_ref[...]
        cT_ref[...] = c0_ref[...]

    # (1) Batched input projection for the whole time block (M = Lt*Bp rows on
    #     the MXU instead of Bp rows per step), staged in VMEM scratch so the
    #     serial loop below only slices it.  bf16 x bf16 -> f32 accumulate.
    gin_ref[...] = (jnp.dot(x_ref[...], wih_ref[...],
                            preferred_element_type=jnp.float32)
                    + b_ref[...])

    h = hT_ref[...]          # f32 (Bp, Hp)
    c = cT_ref[...]          # f32 (Bp, Hp)

    # (2) Serial recurrence within the block.  Only h @ W_hh (bf16 MXU) plus
    #     f32 VPU/EUP gate math sits on the critical path.  Gate order follows
    #     PyTorch nn.LSTM: [i, f, g, o]; each gate is a full 128-lane-aligned
    #     block of width Hp.  Lt is small and static, so a Python loop here is
    #     a full unroll with live ranges bounded by the grid-step boundary.
    for t in range(lt):
        g = gin_ref[pl.ds(t * bb, bb), :] + jnp.dot(
            h.astype(jnp.bfloat16), whh_ref[...],
            preferred_element_type=jnp.float32)
        i_g = jax.nn.sigmoid(g[:, 0 * Hp:1 * Hp])
        f_g = jax.nn.sigmoid(g[:, 1 * Hp:2 * Hp])
        g_g = jnp.tanh(g[:, 2 * Hp:3 * Hp])
        o_g = jax.nn.sigmoid(g[:, 3 * Hp:4 * Hp])
        c_new = f_g * c + i_g * g_g
        h_new = o_g * jnp.tanh(c_new)
        if mask_tail:
            # Time steps beyond the real sequence length (padding of L up to a
            # multiple of Lt) must not advance the state.
            valid = (tb * lt + t) < seq_len
            c_new = jnp.where(valid, c_new, c)
            h_new = jnp.where(valid, h_new, h)
        c, h = c_new, h_new
        hseq_ref[pl.ds(t * bb, bb), :] = h.astype(hseq_ref.dtype)

    # (3) Deferred output projection: one (Lt*Bp, Hp) @ (Hp, Vp) bf16 matmul +
    #     bias, one lane-dense f32 store of the block's scores.
    scores_ref[...] = (jnp.dot(hseq_ref[...], wout_ref[...],
                               preferred_element_type=jnp.float32)
                       + bout_ref[...])

    # (4) Persist the state for the next block / final dec_hidden.
    hT_ref[...] = h
    cT_ref[...] = c


class CharDecoderPallas:
    """JAX/Pallas equivalent of CharDecoder.forward()."""

    def __init__(self, hidden_size, char_embedding_size=50, vocab_size=96,
                 pad_idx=0, key=None):
        self.H = hidden_size
        self.E = char_embedding_size
        self.V = vocab_size
        self.pad_idx = pad_idx

        key = jax.random.PRNGKey(0) if key is None else key
        ks = jax.random.split(key, 7)
        bound = 1.0 / jnp.sqrt(jnp.float32(hidden_size))

        def uinit(k, shape):
            return jax.random.uniform(k, shape, jnp.float32, -bound, bound)

        H, E, V = self.H, self.E, self.V
        # nn.LSTM(char_embedding_size, hidden_size) parameters (PyTorch layout)
        self.w_ih = uinit(ks[0], (4 * H, E))
        self.w_hh = uinit(ks[1], (4 * H, H))
        self.b_ih = uinit(ks[2], (4 * H,))
        self.b_hh = uinit(ks[3], (4 * H,))
        # nn.Linear(hidden_size, vocab_size, bias=True)
        self.w_out = uinit(ks[4], (V, H))
        self.b_out = uinit(ks[5], (V,))
        # nn.Embedding(vocab_size, char_embedding_size, padding_idx=pad_idx)
        emb = jax.random.normal(ks[6], (V, E), jnp.float32) * 0.1
        self.emb = emb.at[pad_idx].set(0.0)

        # ---- precompute padded / transposed / bf16 parameters ---------------
        # Pad E, H, V to 128 multiples so every tile is lane-dense and every
        # gate slice is a full 128-lane-aligned block.  Padded rows/cols are
        # zero, so padded hidden units stay exactly 0 and contribute nothing.
        # Matmul operands (weights, embeddings) are stored in bf16 for the MXU;
        # biases stay f32 (added after f32 accumulation).
        Hp = _round_up(H, 128)
        Ep = _round_up(E, 128)
        Vp = _round_up(V, 128)
        self.Hp, self.Ep, self.Vp = Hp, Ep, Vp

        w_ih_g = self.w_ih.reshape(4, H, E)
        w_ih_g = jnp.pad(w_ih_g, ((0, 0), (0, Hp - H), (0, Ep - E)))
        self._wih_p = jnp.transpose(w_ih_g, (2, 0, 1)).reshape(
            Ep, 4 * Hp).astype(jnp.bfloat16)

        w_hh_g = self.w_hh.reshape(4, H, H)
        w_hh_g = jnp.pad(w_hh_g, ((0, 0), (0, Hp - H), (0, Hp - H)))
        self._whh_p = jnp.transpose(w_hh_g, (2, 0, 1)).reshape(
            Hp, 4 * Hp).astype(jnp.bfloat16)

        b_g = (self.b_ih + self.b_hh).reshape(4, H)
        self._b_p = jnp.pad(b_g, ((0, 0), (0, Hp - H))).reshape(1, 4 * Hp)

        self._wout_p = jnp.pad(
            self.w_out, ((0, Vp - V), (0, Hp - H))).T.astype(jnp.bfloat16)
        self._bout_p = jnp.pad(self.b_out, (0, Vp - V)).reshape(1, Vp)
        self._emb_p = jnp.pad(
            self.emb, ((0, 0), (0, Ep - E))).astype(jnp.bfloat16)   # (V, Ep)

    def forward(self, inp, dec_hidden=None, *, time_block=8):
        """inp: (L, B) int32 char ids.  dec_hidden: tuple of (1, B, H) or None.

        Returns (scores (L, B, V), (h (1, B, H), c (1, B, H)))."""
        L, B = inp.shape
        H, V = self.H, self.V
        Hp, Ep, Vp = self.Hp, self.Ep, self.Vp

        Bp = _round_up(B, 8)                 # sublane-aligned batch
        Lt = max(1, min(time_block, L))      # time steps per grid block
        Lp = _round_up(L, Lt)
        nt = Lp // Lt

        # Embedding lookup (glue, plain JAX gather) in bf16, padded & flattened
        # time-major: row index = time * Bp + batch.
        # TODO(synk): the embedding gather stays in XLA; an in-kernel gather via
        # scalar-prefetched ids is possible but not worth it at these sizes.
        x = jnp.take(self._emb_p, inp, axis=0)            # (L, B, Ep) bf16
        if Lp != L or Bp != B:
            x = jnp.pad(x, ((0, Lp - L), (0, Bp - B), (0, 0)))
        x = x.reshape(Lp * Bp, Ep)

        if dec_hidden is None:
            h0 = jnp.zeros((Bp, Hp), jnp.float32)
            c0 = jnp.zeros((Bp, Hp), jnp.float32)
        else:
            h0 = dec_hidden[0].reshape(B, H)
            c0 = dec_hidden[1].reshape(B, H)
            if Bp != B or Hp != H:
                h0 = jnp.pad(h0, ((0, Bp - B), (0, Hp - H)))
                c0 = jnp.pad(c0, ((0, Bp - B), (0, Hp - H)))

        kernel = functools.partial(_char_decoder_kernel, lt=Lt, bb=Bp,
                                   seq_len=L, mask_tail=(Lp != L))

        scores_p, hT_p, cT_p = pl.pallas_call(
            kernel,
            out_shape=(
                jax.ShapeDtypeStruct((Lp * Bp, Vp), jnp.float32),
                jax.ShapeDtypeStruct((Bp, Hp), jnp.float32),
                jax.ShapeDtypeStruct((Bp, Hp), jnp.float32),
            ),
            grid_spec=pltpu.PrefetchScalarGridSpec(
                num_scalar_prefetch=0,
                grid=(nt,),   # time-block axis: pipelined x prefetch / scores writeback
                in_specs=[
                    pl.BlockSpec((Lt * Bp, Ep), lambda t: (t, 0)),   # x block
                    pl.BlockSpec((Ep, 4 * Hp), lambda t: (0, 0)),    # w_ih^T (resident)
                    pl.BlockSpec((Hp, 4 * Hp), lambda t: (0, 0)),    # w_hh^T (resident)
                    pl.BlockSpec((1, 4 * Hp), lambda t: (0, 0)),     # bias
                    pl.BlockSpec((Hp, Vp), lambda t: (0, 0)),        # w_out^T (resident)
                    pl.BlockSpec((1, Vp), lambda t: (0, 0)),         # b_out
                    pl.BlockSpec((Bp, Hp), lambda t: (0, 0)),        # h0
                    pl.BlockSpec((Bp, Hp), lambda t: (0, 0)),        # c0
                ],
                out_specs=[
                    pl.BlockSpec((Lt * Bp, Vp), lambda t: (t, 0)),   # scores block
                    pl.BlockSpec((Bp, Hp), lambda t: (0, 0)),        # h state (resident)
                    pl.BlockSpec((Bp, Hp), lambda t: (0, 0)),        # c state (resident)
                ],
                scratch_shapes=[
                    pltpu.VMEM((Lt * Bp, 4 * Hp), jnp.float32),   # input-projection gates
                    pltpu.VMEM((Lt * Bp, Hp), jnp.bfloat16),      # per-step hidden states
                ],
            ),
            compiler_params=pltpu.CompilerParams(
                dimension_semantics=("arbitrary",)),   # serial recurrence over blocks
        )(x, self._wih_p, self._whh_p, self._b_p, self._wout_p, self._bout_p,
          h0, c0)

        # TODO(synk): the un-pad slice below is an XLA copy; keep padded scores
        # and fuse the downstream loss/softmax to avoid it when it matters.
        scores = scores_p.reshape(Lp, Bp, Vp)[:L, :B, :V]
        hT = hT_p[:B, :H].reshape(1, B, H)
        cT = cT_p[:B, :H].reshape(1, B, H)
        return scores, (hT, cT)

    # Pure-JAX reference (mirrors PyTorch nn.LSTM + nn.Linear math, f32).
    def forward_ref(self, inp, dec_hidden=None):
        L, B = inp.shape
        H = self.H
        x = jnp.take(self.emb, inp, axis=0)
        if dec_hidden is None:
            h = jnp.zeros((B, H), jnp.float32)
            c = jnp.zeros((B, H), jnp.float32)
        else:
            h = dec_hidden[0].reshape(B, H)
            c = dec_hidden[1].reshape(B, H)

        def step(carry, x_t):
            h, c = carry
            gates = x_t @ self.w_ih.T + h @ self.w_hh.T + self.b_ih + self.b_hh
            i_g = jax.nn.sigmoid(gates[:, 0 * H:1 * H])
            f_g = jax.nn.sigmoid(gates[:, 1 * H:2 * H])
            g_g = jnp.tanh(gates[:, 2 * H:3 * H])
            o_g = jax.nn.sigmoid(gates[:, 3 * H:4 * H])
            c_new = f_g * c + i_g * g_g
            h_new = o_g * jnp.tanh(c_new)
            s = h_new @ self.w_out.T + self.b_out
            return (h_new, c_new), s

        (hT, cT), scores = jax.lax.scan(step, (h, c), x)
        return scores, (hT.reshape(1, B, H), cT.reshape(1, B, H))


if __name__ == "__main__":
    # Small shapes: hidden=32, char_embed=50, vocab=96.
    H, E, V = 32, 50, 96
    dec = CharDecoderPallas(hidden_size=H, char_embedding_size=E,
                            vocab_size=V, pad_idx=0,
                            key=jax.random.PRNGKey(0))

    key = jax.random.PRNGKey(0)
    k_in, k_h, k_c, k_in2 = jax.random.split(key, 4)

    # bf16 matmul operands vs. the f32 reference -> relaxed tolerance.
    ATOL = RTOL = 3e-2

    # Check 1: L=8, B=8, with initial state, time_block=4 -> 2 time blocks,
    # exercising state carry across grid steps.
    L, B = 8, 8
    char_ids = jax.random.randint(k_in, (L, B), 0, V, dtype=jnp.int32)
    h0 = jax.random.normal(k_h, (1, B, H), jnp.float32)
    c0 = jax.random.normal(k_c, (1, B, H), jnp.float32)

    scores, (hT, cT) = dec.forward(char_ids, (h0, c0), time_block=4)
    jax.block_until_ready((scores, hT, cT))

    scores_r, (hT_r, cT_r) = dec.forward_ref(char_ids, (h0, c0))
    assert scores.shape == (L, B, V) and hT.shape == (1, B, H) and cT.shape == (1, B, H)
    assert jnp.allclose(scores, scores_r, atol=ATOL, rtol=RTOL)
    assert jnp.allclose(hT, hT_r, atol=ATOL, rtol=RTOL)
    assert jnp.allclose(cT, cT_r, atol=ATOL, rtol=RTOL)

    # Check 2: L=7, B=5, no initial state, time_block=4 -> exercises time-tail
    # masking (L padded to 8) and batch padding (B padded to 8).
    L2, B2 = 7, 5
    char_ids2 = jax.random.randint(k_in2, (L2, B2), 0, V, dtype=jnp.int32)
    scores2, (hT2, cT2) = dec.forward(char_ids2, None, time_block=4)
    jax.block_until_ready((scores2, hT2, cT2))

    scores2_r, (hT2_r, cT2_r) = dec.forward_ref(char_ids2, None)
    assert scores2.shape == (L2, B2, V)
    assert jnp.allclose(scores2, scores2_r, atol=ATOL, rtol=RTOL)
    assert jnp.allclose(hT2, hT2_r, atol=ATOL, rtol=RTOL)
    assert jnp.allclose(cT2, cT2_r, atol=ATOL, rtol=RTOL)

    # TODO(synk): train_forward (masked sum cross-entropy) and decode_greedy
    # (host-side python string loop) are glue around this forward kernel and
    # are not implemented as Pallas kernels here.
    print("KERNEL_OK")
</pallas_src>

<mosaic_0001>
module attributes {stable_mosaic.version = 11 : i64} {
  func.func @_char_decoder_kernel(%arg0: i32, %arg1: memref<32x128xbf16, #tpu.memory_space<vmem>>, %arg2: memref<128x512xbf16, #tpu.memory_space<vmem>>, %arg3: memref<128x512xbf16, #tpu.memory_space<vmem>>, %arg4: memref<1x512xf32, #tpu.memory_space<vmem>>, %arg5: memref<128x128xbf16, #tpu.memory_space<vmem>>, %arg6: memref<1x128xf32, #tpu.memory_space<vmem>>, %arg7: memref<8x128xf32, #tpu.memory_space<vmem>>, %arg8: memref<8x128xf32, #tpu.memory_space<vmem>>, %arg9: memref<32x128xf32, #tpu.memory_space<vmem>>, %arg10: memref<8x128xf32, #tpu.memory_space<vmem>>, %arg11: memref<8x128xf32, #tpu.memory_space<vmem>>, %arg12: memref<32x512xf32, #tpu.memory_space<vmem>>, %arg13: memref<32x128xbf16, #tpu.memory_space<vmem>>) attributes {dimension_semantics = [#tpu.dimension_semantics<arbitrary>], iteration_bounds = array<i64: 2>, scalar_prefetch = 0 : i64, scratch_operands = 2 : i64, tpu.core_type = #tpu.core_type<tc>, window_params = [{transform_indices = @transform_0, window_bounds = array<i64: 32, 128>}, {pipeline_mode = #tpu.pipeline_mode<synchronous>, transform_indices = @transform_1, window_bounds = array<i64: 128, 512>}, {pipeline_mode = #tpu.pipeline_mode<synchronous>, transform_indices = @transform_2, window_bounds = array<i64: 128, 512>}, {pipeline_mode = #tpu.pipeline_mode<synchronous>, transform_indices = @transform_3, window_bounds = array<i64: 1, 512>}, {pipeline_mode = #tpu.pipeline_mode<synchronous>, transform_indices = @transform_4, window_bounds = array<i64: 128, 128>}, {pipeline_mode = #tpu.pipeline_mode<synchronous>, transform_indices = @transform_5, window_bounds = array<i64: 1, 128>}, {pipeline_mode = #tpu.pipeline_mode<synchronous>, transform_indices = @transform_6, window_bounds = array<i64: 8, 128>}, {pipeline_mode = #tpu.pipeline_mode<synchronous>, transform_indices = @transform_7, window_bounds = array<i64: 8, 128>}, {transform_indices = @transform_8, window_bounds = array<i64: 32, 128>}, {pipeline_mode = #tpu.pipeline_mode<synchronous>, transform_indices = @transform_9, window_bounds = array<i64: 8, 128>}, {pipeline_mode = #tpu.pipeline_mode<synchronous>, transform_indices = @transform_10, window_bounds = array<i64: 8, 128>}]} {
    %c0_i32 = arith.constant 0 : i32
    %0 = arith.cmpi eq, %arg0, %c0_i32 : i32
    %1 = arith.extui %0 : i1 to i32
    %c0_i32_0 = arith.constant 0 : i32
    %2 = arith.cmpi ne, %1, %c0_i32_0 : i32
    scf.if %2 {
      %c0_62 = arith.constant 0 : index
      %c0_63 = arith.constant 0 : index
      %149 = vector.load %arg7[%c0_62, %c0_63] : memref<8x128xf32, #tpu.memory_space<vmem>>, vector<8x128xf32>
      %c0_64 = arith.constant 0 : index
      %c0_65 = arith.constant 0 : index
      %150 = vector.load %arg10[%c0_64, %c0_65] : memref<8x128xf32, #tpu.memory_space<vmem>>, vector<8x128xf32>
      tpu.vector_store %arg10[%c0_64, %c0_65], %149 {strides = array<i32>} : memref<8x128xf32, #tpu.memory_space<vmem>>, vector<8x128xf32>,
      %c0_66 = arith.constant 0 : index
      %c0_67 = arith.constant 0 : index
      %151 = vector.load %arg8[%c0_66, %c0_67] : memref<8x128xf32, #tpu.memory_space<vmem>>, vector<8x128xf32>
      %c0_68 = arith.constant 0 : index
      %c0_69 = arith.constant 0 : index
      %152 = vector.load %arg11[%c0_68, %c0_69] : memref<8x128xf32, #tpu.memory_space<vmem>>, vector<8x128xf32>
      tpu.vector_store %arg11[%c0_68, %c0_69], %151 {strides = array<i32>} : memref<8x128xf32, #tpu.memory_space<vmem>>, vector<8x128xf32>,
    } else {
    }
    %c0 = arith.constant 0 : index
    %c0_1 = arith.constant 0 : index
    %3 = vector.load %arg1[%c0, %c0_1] : memref<32x128xbf16, #tpu.memory_space<vmem>>, vector<32x128xbf16>
    %c0_2 = arith.constant 0 : index
    %c0_3 = arith.constant 0 : index
    %4 = vector.load %arg2[%c0_2, %c0_3] : memref<128x512xbf16, #tpu.memory_space<vmem>>, vector<128x512xbf16>
    %cst = arith.constant dense<0.000000e+00> : vector<32x512xf32>
    %5 = tpu.matmul %3, %4, %cst {dimension_numbers = #tpu.dot_dimension_numbers<[1], [0], [0], [1], [0, 0, 1, 1], [], []>} : vector<32x128xbf16>, vector<128x512xbf16>, vector<32x512xf32> -> vector<32x512xf32>
    %c0_4 = arith.constant 0 : index
    %c0_5 = arith.constant 0 : index
    %6 = vector.load %arg4[%c0_4, %c0_5] : memref<1x512xf32, #tpu.memory_space<vmem>>, vector<1x512xf32>
    %7 = vector.broadcast %6 : vector<1x512xf32> to vector<32x512xf32>
    %8 = arith.addf %5, %7 : vector<32x512xf32>
    %c0_6 = arith.constant 0 : index
    %c0_7 = arith.constant 0 : index
    %9 = vector.load %arg12[%c0_6, %c0_7] : memref<32x512xf32, #tpu.memory_space<vmem>>, vector<32x512xf32>
    tpu.vector_store %arg12[%c0_6, %c0_7], %8 {strides = array<i32>} : memref<32x512xf32, #tpu.memory_space<vmem>>, vector<32x512xf32>,
    %c0_8 = arith.constant 0 : index
    %c0_9 = arith.constant 0 : index
    %10 = vector.load %arg10[%c0_8, %c0_9] : memref<8x128xf32, #tpu.memory_space<vmem>>, vector<8x128xf32>
    %c0_10 = arith.constant 0 : index
    %c0_11 = arith.constant 0 : index
    %11 = vector.load %arg11[%c0_10, %c0_11] : memref<8x128xf32, #tpu.memory_space<vmem>>, vector<8x128xf32>
    %c0_12 = arith.constant 0 : index
    %c0_13 = arith.constant 0 : index
    %12 = vector.load %arg12[%c0_12, %c0_13] : memref<32x512xf32, #tpu.memory_space<vmem>>, vector<8x512xf32>
    %13 = arith.truncf %10 : vector<8x128xf32> to vector<8x128xbf16>
    %c0_14 = arith.constant 0 : index
    %c0_15 = arith.constant 0 : index
    %14 = vector.load %arg3[%c0_14, %c0_15] : memref<128x512xbf16, #tpu.memory_space<vmem>>, vector<128x512xbf16>
    %cst_16 = arith.constant dense<0.000000e+00> : vector<8x512xf32>
    %15 = tpu.matmul %13, %14, %cst_16 {dimension_numbers = #tpu.dot_dimension_numbers<[1], [0], [0], [1], [0, 0, 1, 1], [], []>} : vector<8x128xbf16>, vector<128x512xbf16>, vector<8x512xf32> -> vector<8x512xf32>
    %16 = arith.addf %12, %15 : vector<8x512xf32>
    %17 = vector.extract_strided_slice %16 {offsets = [0, 0], sizes = [8, 128], strides = [1, 1]} : vector<8x512xf32> to vector<8x128xf32>
    %18 = arith.negf %17 : vector<8x128xf32>
    %19 = math.exp %18 : vector<8x128xf32>
    %cst_17 = arith.constant 1.000000e+00 : f32
    %20 = vector.broadcast %cst_17 : f32 to vector<8x128xf32>
    %21 = arith.addf %20, %19 : vector<8x128xf32>
    %22 = arith.divf %20, %21 : vector<8x128xf32>
    %23 = vector.extract_strided_slice %16 {offsets = [0, 128], sizes = [8, 128], strides = [1, 1]} : vector<8x512xf32> to vector<8x128xf32>
    %24 = arith.negf %23 : vector<8x128xf32>
    %25 = math.exp %24 : vector<8x128xf32>
    %cst_18 = arith.constant 1.000000e+00 : f32
    %26 = vector.broadcast %cst_18 : f32 to vector<8x128xf32>
    %27 = arith.addf %26, %25 : vector<8x128xf32>
    %28 = arith.divf %26, %27 : vector<8x128xf32>
    %29 = vector.extract_strided_slice %16 {offsets = [0, 256], sizes = [8, 128], strides = [1, 1]} : vector<8x512xf32> to vector<8x128xf32>
    %30 = math.tanh %29 : vector<8x128xf32>
    %31 = vector.extract_strided_slice %16 {offsets = [0, 384], sizes = [8, 128], strides = [1, 1]} : vector<8x512xf32> to vector<8x128xf32>
    %32 = arith.negf %31 : vector<8x128xf32>
    %33 = math.exp %32 : vector<8x128xf32>
    %cst_19 = arith.constant 1.000000e+00 : f32
    %34 = vector.broadcast %cst_19 : f32 to vector<8x128xf32>
    %35 = arith.addf %34, %33 : vector<8x128xf32>
    %36 = arith.divf %34, %35 : vector<8x128xf32>
    %37 = arith.mulf %28, %11 : vector<8x128xf32>
    %38 = arith.mulf %22, %30 : vector<8x128xf32>
    %39 = arith.addf %37, %38 : vector<8x128xf32>
    %40 = math.tanh %39 : vector<8x128xf32>
    %41 = arith.mulf %36, %40 : vector<8x128xf32>
    %42 = arith.truncf %41 : vector<8x128xf32> to vector<8x128xbf16>
    %c0_20 = arith.constant 0 : index
    %c0_21 = arith.constant 0 : index
    %43 = vector.load %arg13[%c0_20, %c0_21] : memref<32x128xbf16, #tpu.memory_space<vmem>>, vector<8x128xbf16>
    tpu.vector_store %arg13[%c0_20, %c0_21], %42 {strides = array<i32>} : memref<32x128xbf16, #tpu.memory_space<vmem>>, vector<8x128xbf16>,
    %c8 = arith.constant 8 : index
    %c0_22 = arith.constant 0 : index
    %44 = vector.load %arg12[%c8, %c0_22] : memref<32x512xf32, #tpu.memory_space<vmem>>, vector<8x512xf32>
    %45 = arith.truncf %41 : vector<8x128xf32> to vector<8x128xbf16>
    %c0_23 = arith.constant 0 : index
    %c0_24 = arith.constant 0 : index
    %46 = vector.load %arg3[%c0_23, %c0_24] : memref<128x512xbf16, #tpu.memory_space<vmem>>, vector<128x512xbf16>
    %cst_25 = arith.constant dense<0.000000e+00> : vector<8x512xf32>
    %47 = tpu.matmul %45, %46, %cst_25 {dimension_numbers = #tpu.dot_dimension_numbers<[1], [0], [0], [1], [0, 0, 1, 1], [], []>} : vector<8x128xbf16>, vector<128x512xbf16>, vector<8x512xf32> -> vector<8x512xf32>
    %48 = arith.addf %44, %47 : vector<8x512xf32>
    %49 = vector.extract_strided_slice %48 {offsets = [0, 0], sizes = [8, 128], strides = [1, 1]} : vector<8x512xf32> to vector<8x128xf32>
    %50 = arith.negf %49 : vector<8x128xf32>
    %51 = math.exp %50 : vector<8x128xf32>
    %cst_26 = arith.constant 1.000000e+00 : f32
    %52 = vector.broadcast %cst_26 : f32 to vector<8x128xf32>
    %53 = arith.addf %52, %51 : vector<8x128xf32>
    %54 = arith.divf %52, %53 : vector<8x128xf32>
    %55 = vector.extract_strided_slice %48 {offsets = [0, 128], sizes = [8, 128], strides = [1, 1]} : vector<8x512xf32> to vector<8x128xf32>
    %56 = arith.negf %55 : vector<8x128xf32>
    %57 = math.exp %56 : vector<8x128xf32>
    %cst_27 = arith.constant 1.000000e+00 : f32
    %58 = vector.broadcast %cst_27 : f32 to vector<8x128xf32>
    %59 = arith.addf %58, %57 : vector<8x128xf32>
    %60 = arith.divf %58, %59 : vector<8x128xf32>
    %61 = vector.extract_strided_slice %48 {offsets = [0, 256], sizes = [8, 128], strides = [1, 1]} : vector<8x512xf32> to vector<8x128xf32>
    %62 = math.tanh %61 : vector<8x128xf32>
    %63 = vector.extract_strided_slice %48 {offsets = [0, 384], sizes = [8, 128], strides = [1, 1]} : vector<8x512xf32> to vector<8x128xf32>
    %64 = arith.negf %63 : vector<8x128xf32>
    %65 = math.exp %64 : vector<8x128xf32>
    %cst_28 = arith.constant 1.000000e+00 : f32
    %66 = vector.broadcast %cst_28 : f32 to vector<8x128xf32>
    %67 = arith.addf %66, %65 : vector<8x128xf32>
    %68 = arith.divf %66, %67 : vector<8x128xf32>
    %69 = arith.mulf %60, %39 : vector<8x128xf32>
    %70 = arith.mulf %54, %62 : vector<8x128xf32>
    %71 = arith.addf %69, %70 : vector<8x128xf32>
    %72 = math.tanh %71 : vector<8x128xf32>
    %73 = arith.mulf %68, %72 : vector<8x128xf32>
    %74 = arith.truncf %73 : vector<8x128xf32> to vector<8x128xbf16>
    %c8_29 = arith.constant 8 : index
    %c0_30 = arith.constant 0 : index
    %75 = vector.load %arg13[%c8_29, %c0_30] : memref<32x128xbf16, #tpu.memory_space<vmem>>, vector<8x128xbf16>
    tpu.vector_store %arg13[%c8_29, %c0_30], %74 {strides = array<i32>} : memref<32x128xbf16, #tpu.memory_space<vmem>>, vector<8x128xbf16>,
    %c16 = arith.constant 16 : index
    %c0_31 = arith.constant 0 : index
    %76 = vector.load %arg12[%c16, %c0_31] : memref<32x512xf32, #tpu.memory_space<vmem>>, vector<8x512xf32>
    %77 = arith.truncf %73 : vector<8x128xf32> to vector<8x128xbf16>
    %c0_32 = arith.constant 0 : index
    %c0_33 = arith.constant 0 : index
    %78 = vector.load %arg3[%c0_32, %c0_33] : memref<128x512xbf16, #tpu.memory_space<vmem>>, vector<128x512xbf16>
    %cst_34 = arith.constant dense<0.000000e+00> : vector<8x512xf32>
    %79 = tpu.matmul %77, %78, %cst_34 {dimension_numbers = #tpu.dot_dimension_numbers<[1], [0], [0], [1], [0, 0, 1, 1], [], []>} : vector<8x128xbf16>, vector<128x512xbf16>, vector<8x512xf32> -> vector<8x512xf32>
    %80 = arith.addf %76, %79 : vector<8x512xf32>
    %81 = vector.extract_strided_slice %80 {offsets = [0, 0], sizes = [8, 128], strides = [1, 1]} : vector<8x512xf32> to vector<8x128xf32>
    %82 = arith.negf %81 : vector<8x128xf32>
    %83 = math.exp %82 : vector<8x128xf32>
    %cst_35 = arith.constant 1.000000e+00 : f32
    %84 = vector.broadcast %cst_35 : f32 to vector<8x128xf32>
    %85 = arith.addf %84, %83 : vector<8x128xf32>
    %86 = arith.divf %84, %85 : vector<8x128xf32>
    %87 = vector.extract_strided_slice %80 {offsets = [0, 128], sizes = [8, 128], strides = [1, 1]} : vector<8x512xf32> to vector<8x128xf32>
    %88 = arith.negf %87 : vector<8x128xf32>
    %89 = math.exp %88 : vector<8x128xf32>
    %cst_36 = arith.constant 1.000000e+00 : f32
    %90 = vector.broadcast %cst_36 : f32 to vector<8x128xf32>
    %91 = arith.addf %90, %89 : vector<8x128xf32>
    %92 = arith.divf %90, %91 : vector<8x128xf32>
    %93 = vector.extract_strided_slice %80 {offsets = [0, 256], sizes = [8, 128], strides = [1, 1]} : vector<8x512xf32> to vector<8x128xf32>
    %94 = math.tanh %93 : vector<8x128xf32>
    %95 = vector.extract_strided_slice %80 {offsets = [0, 384], sizes = [8, 128], strides = [1, 1]} : vector<8x512xf32> to vector<8x128xf32>
    %96 = arith.negf %95 : vector<8x128xf32>
    %97 = math.exp %96 : vector<8x128xf32>
    %cst_37 = arith.constant 1.000000e+00 : f32
    %98 = vector.broadcast %cst_37 : f32 to vector<8x128xf32>
    %99 = arith.addf %98, %97 : vector<8x128xf32>
    %100 = arith.divf %98, %99 : vector<8x128xf32>
    %101 = arith.mulf %92, %71 : vector<8x128xf32>
    %102 = arith.mulf %86, %94 : vector<8x128xf32>
    %103 = arith.addf %101, %102 : vector<8x128xf32>
    %104 = math.tanh %103 : vector<8x128xf32>
    %105 = arith.mulf %100, %104 : vector<8x128xf32>
    %106 = arith.truncf %105 : vector<8x128xf32> to vector<8x128xbf16>
    %c16_38 = arith.constant 16 : index
    %c0_39 = arith.constant 0 : index
    %107 = vector.load %arg13[%c16_38, %c0_39] : memref<32x128xbf16, #tpu.memory_space<vmem>>, vector<8x128xbf16>
    tpu.vector_store %arg13[%c16_38, %c0_39], %106 {strides = array<i32>} : memref<32x128xbf16, #tpu.memory_space<vmem>>, vector<8x128xbf16>,
    %c24 = arith.constant 24 : index
    %c0_40 = arith.constant 0 : index
    %108 = vector.load %arg12[%c24, %c0_40] : memref<32x512xf32, #tpu.memory_space<vmem>>, vector<8x512xf32>
    %109 = arith.truncf %105 : vector<8x128xf32> to vector<8x128xbf16>
    %c0_41 = arith.constant 0 : index
    %c0_42 = arith.constant 0 : index
    %110 = vector.load %arg3[%c0_41, %c0_42] : memref<128x512xbf16, #tpu.memory_space<vmem>>, vector<128x512xbf16>
    %cst_43 = arith.constant dense<0.000000e+00> : vector<8x512xf32>
    %111 = tpu.matmul %109, %110, %cst_43 {dimension_numbers = #tpu.dot_dimension_numbers<[1], [0], [0], [1], [0, 0, 1, 1], [], []>} : vector<8x128xbf16>, vector<128x512xbf16>, vector<8x512xf32> -> vector<8x512xf32>
    %112 = arith.addf %108, %111 : vector<8x512xf32>
    %113 = vector.extract_strided_slice %112 {offsets = [0, 0], sizes = [8, 128], strides = [1, 1]} : vector<8x512xf32> to vector<8x128xf32>
    %114 = arith.negf %113 : vector<8x128xf32>
    %115 = math.exp %114 : vector<8x128xf32>
    %cst_44 = arith.constant 1.000000e+00 : f32
    %116 = vector.broadcast %cst_44 : f32 to vector<8x128xf32>
    %117 = arith.addf %116, %115 : vector<8x128xf32>
    %118 = arith.divf %116, %117 : vector<8x128xf32>
    %119 = vector.extract_strided_slice %112 {offsets = [0, 128], sizes = [8, 128], strides = [1, 1]} : vector<8x512xf32> to vector<8x128xf32>
    %120 = arith.negf %119 : vector<8x128xf32>
    %121 = math.exp %120 : vector<8x128xf32>
    %cst_45 = arith.constant 1.000000e+00 : f32
    %122 = vector.broadcast %cst_45 : f32 to vector<8x128xf32>
    %123 = arith.addf %122, %121 : vector<8x128xf32>
    %124 = arith.divf %122, %123 : vector<8x128xf32>
    %125 = vector.extract_strided_slice %112 {offsets = [0, 256], sizes = [8, 128], strides = [1, 1]} : vector<8x512xf32> to vector<8x128xf32>
    %126 = math.tanh %125 : vector<8x128xf32>
    %127 = vector.extract_strided_slice %112 {offsets = [0, 384], sizes = [8, 128], strides = [1, 1]} : vector<8x512xf32> to vector<8x128xf32>
    %128 = arith.negf %127 : vector<8x128xf32>
    %129 = math.exp %128 : vector<8x128xf32>
    %cst_46 = arith.constant 1.000000e+00 : f32
    %130 = vector.broadcast %cst_46 : f32 to vector<8x128xf32>
    %131 = arith.addf %130, %129 : vector<8x128xf32>
    %132 = arith.divf %130, %131 : vector<8x128xf32>
    %133 = arith.mulf %124, %103 : vector<8x128xf32>
    %134 = arith.mulf %118, %126 : vector<8x128xf32>
    %135 = arith.addf %133, %134 : vector<8x128xf32>
    %136 = math.tanh %135 : vector<8x128xf32>
    %137 = arith.mulf %132, %136 : vector<8x128xf32>
    %138 = arith.truncf %137 : vector<8x128xf32> to vector<8x128xbf16>
    %c24_47 = arith.constant 24 : index
    %c0_48 = arith.constant 0 : index
    %139 = vector.load %arg13[%c24_47, %c0_48] : memref<32x128xbf16, #tpu.memory_space<vmem>>, vector<8x128xbf16>
    tpu.vector_store %arg13[%c24_47, %c0_48], %138 {strides = array<i32>} : memref<32x128xbf16, #tpu.memory_space<vmem>>, vector<8x128xbf16>,
    %c0_49 = arith.constant 0 : index
    %c0_50 = arith.constant 0 : index
    %140 = vector.load %arg13[%c0_49, %c0_50] : memref<32x128xbf16, #tpu.memory_space<vmem>>, vector<32x128xbf16>
    %c0_51 = arith.constant 0 : index
    %c0_52 = arith.constant 0 : index
    %141 = vector.load %arg5[%c0_51, %c0_52] : memref<128x128xbf16, #tpu.memory_space<vmem>>, vector<128x128xbf16>
    %cst_53 = arith.constant dense<0.000000e+00> : vector<32x128xf32>
    %142 = tpu.matmul %140, %141, %cst_53 {dimension_numbers = #tpu.dot_dimension_numbers<[1], [0], [0], [1], [0, 0, 1, 1], [], []>} : vector<32x128xbf16>, vector<128x128xbf16>, vector<32x128xf32> -> vector<32x128xf32>
    %c0_54 = arith.constant 0 : index
    %c0_55 = arith.constant 0 : index
    %143 = vector.load %arg6[%c0_54, %c0_55] : memref<1x128xf32, #tpu.memory_space<vmem>>, vector<1x128xf32>
    %144 = vector.broadcast %143 : vector<1x128xf32> to vector<32x128xf32>
    %145 = arith.addf %142, %144 : vector<32x128xf32>
    %c0_56 = arith.constant 0 : index
    %c0_57 = arith.constant 0 : index
    %146 = vector.load %arg9[%c0_56, %c0_57] : memref<32x128xf32, #tpu.memory_space<vmem>>, vector<32x128xf32>
    tpu.vector_store %arg9[%c0_56, %c0_57], %145 {strides = array<i32>} : memref<32x128xf32, #tpu.memory_space<vmem>>, vector<32x128xf32>,
    %c0_58 = arith.constant 0 : index
    %c0_59 = arith.constant 0 : index
    %147 = vector.load %arg10[%c0_58, %c0_59] : memref<8x128xf32, #tpu.memory_space<vmem>>, vector<8x128xf32>
    tpu.vector_store %arg10[%c0_58, %c0_59], %137 {strides = array<i32>} : memref<8x128xf32, #tpu.memory_space<vmem>>, vector<8x128xf32>,
    %c0_60 = arith.constant 0 : index
    %c0_61 = arith.constant 0 : index
    %148 = vector.load %arg11[%c0_60, %c0_61] : memref<8x128xf32, #tpu.memory_space<vmem>>, vector<8x128xf32>
    tpu.vector_store %arg11[%c0_60, %c0_61], %135 {strides = array<i32>} : memref<8x128xf32, #tpu.memory_space<vmem>>, vector<8x128xf32>,
    return
  }
  func.func @transform_0(%arg0: i32) -> (i32, i32) {
    %c0_i32 = arith.constant 0 : i32
    %c0_i32_0 = arith.constant 0 : i32
    return %arg0, %c0_i32 : i32, i32
  }
  func.func @transform_1(%arg0: i32) -> (i32, i32) {
    %c0_i32 = arith.constant 0 : i32
    %c0_i32_0 = arith.constant 0 : i32
    %c0_i32_1 = arith.constant 0 : i32
    return %c0_i32, %c0_i32_0 : i32, i32
  }
  func.func @transform_2(%arg0: i32) -> (i32, i32) {
    %c0_i32 = arith.constant 0 : i32
    %c0_i32_0 = arith.constant 0 : i32
    %c0_i32_1 = arith.constant 0 : i32
    return %c0_i32, %c0_i32_0 : i32, i32
  }
  func.func @transform_3(%arg0: i32) -> (i32, i32) {
    %c0_i32 = arith.constant 0 : i32
    %c0_i32_0 = arith.constant 0 : i32
    %c0_i32_1 = arith.constant 0 : i32
    return %c0_i32, %c0_i32_0 : i32, i32
  }
  func.func @transform_4(%arg0: i32) -> (i32, i32) {
    %c0_i32 = arith.constant 0 : i32
    %c0_i32_0 = arith.constant 0 : i32
    %c0_i32_1 = arith.constant 0 : i32
    return %c0_i32, %c0_i32_0 : i32, i32
  }
  func.func @transform_5(%arg0: i32) -> (i32, i32) {
    %c0_i32 = arith.constant 0 : i32
    %c0_i32_0 = arith.constant 0 : i32
    %c0_i32_1 = arith.constant 0 : i32
    return %c0_i32, %c0_i32_0 : i32, i32
  }
  func.func @transform_6(%arg0: i32) -> (i32, i32) {
    %c0_i32 = arith.constant 0 : i32
    %c0_i32_0 = arith.constant 0 : i32
    %c0_i32_1 = arith.constant 0 : i32
    return %c0_i32, %c0_i32_0 : i32, i32
  }
  func.func @transform_7(%arg0: i32) -> (i32, i32) {
    %c0_i32 = arith.constant 0 : i32
    %c0_i32_0 = arith.constant 0 : i32
    %c0_i32_1 = arith.constant 0 : i32
    return %c0_i32, %c0_i32_0 : i32, i32
  }
  func.func @transform_8(%arg0: i32) -> (i32, i32) {
    %c0_i32 = arith.constant 0 : i32
    %c0_i32_0 = arith.constant 0 : i32
    return %arg0, %c0_i32 : i32, i32
  }
  func.func @transform_9(%arg0: i32) -> (i32, i32) {
    %c0_i32 = arith.constant 0 : i32
    %c0_i32_0 = arith.constant 0 : i32
    %c0_i32_1 = arith.constant 0 : i32
    return %c0_i32, %c0_i32_0 : i32, i32
  }
  func.func @transform_10(%arg0: i32) -> (i32, i32) {
    %c0_i32 = arith.constant 0 : i32
    %c0_i32_0 = arith.constant 0 : i32
    %c0_i32_1 = arith.constant 0 : i32
    return %c0_i32, %c0_i32_0 : i32, i32
  }
}

</mosaic_0001>

<llo_original>
// kernel: tpu_custom_call.1
$region0: #{tpu_custom_call.1}
  #allocation0 [shape = 'u32[]', space=smem, size = 0x4, offset = 0x4, fixed_abs, tag = 'smem constant byte address 0x4 - core index']
  #allocation1 [shape = 'u32[144,128]{1,0:T(1,128)}', space=vmem, size = 0x12000, scoped, tag = 'internal scratch']
  #allocation2 [shape = 'f32[32,512]{1,0:T(8,128)}', space=vmem, size = 0x10000, scoped, tag = 'scratch operand']
  #allocation3 [shape = 'bf16[32,128]{1,0:T(8,128)(2,1)}', space=vmem, size = 0x2000, scoped, tag = 'scratch operand']
  %s0 = inlined_call_operand.hbm [shape: bf16[64,128], index: 0, kind: input, shape index: {}]
  %s1 = inlined_call_operand.hbm [shape: bf16[128,512], index: 1, kind: input, shape index: {}]
  %s2 = inlined_call_operand.hbm [shape: bf16[128,512], index: 2, kind: input, shape index: {}]
  %s3 = inlined_call_operand.hbm [shape: f32[1,512], index: 3, kind: input, shape index: {}]
  %s4 = inlined_call_operand.hbm [shape: bf16[128,128], index: 4, kind: input, shape index: {}]
  %s5 = inlined_call_operand.vmem [shape: f32[1,128], index: 5, kind: input, shape index: {}]
  %s6 = inlined_call_operand.vmem [shape: f32[8,128], index: 6, kind: input, shape index: {}]
  %s7 = inlined_call_operand.hbm [shape: f32[8,128], index: 7, kind: input, shape index: {}]
  %s8 = inlined_call_operand.hbm [shape: f32[64,128], index: 8, kind: output, shape index: {0}]
  %s9 = inlined_call_operand.hbm [shape: f32[8,128], index: 9, kind: output, shape index: {1}]
  %s10 = inlined_call_operand.hbm [shape: f32[8,128], index: 10, kind: output, shape index: {2}]
  %11 = xla_tuple %s8, %s9, %s10
  %s12 = sld [smem:[#allocation0]]
  $region109: #{tpu_custom_call.1} parent=0
    _
  %s14 = ssub.s32 1, %s12
  %s15 = scalar_select 0, %s14, %s12
  $region1: #{tpu_custom_call.1} parent=0
    #allocation4 [shape = 'u8[16384]{0}', space=vmem, size = 0x4000, scoped, tag = 'input window, operand 0']
    #allocation5 [shape = 's32[2]{0}', space=sflag, size = 0x8, scoped, tag = 'scoped memory for tpu_custom_call.1']
    #allocation6 [shape = 's32[2]{0}', space=sflag, size = 0x8, scoped, tag = 'scoped memory for tpu_custom_call.1']
    #allocation7 [shape = 'u8[131072]{0}', space=vmem, size = 0x20000, scoped, tag = 'input window, operand 1, single buffered']
    #allocation8 [shape = 's32[1]{0}', space=sflag, size = 0x4, scoped, tag = 'scoped memory for tpu_custom_call.1']
    #allocation9 [shape = 'u8[131072]{0}', space=vmem, size = 0x20000, scoped, tag = 'input window, operand 2, single buffered']
    #allocation10 [shape = 'u8[2048]{0}', space=vmem, size = 0x800, scoped, tag = 'input window, operand 3, single buffered']
    #allocation11 [shape = 's32[1]{0}', space=sflag, size = 0x4, scoped, tag = 'scoped memory for tpu_custom_call.1']
    #allocation12 [shape = 'u8[32768]{0}', space=vmem, size = 0x8000, scoped, tag = 'input window, operand 4, single buffered']
    #allocation13 [shape = 'u8[4096]{0}', space=vmem, size = 0x1000, scoped, tag = 'input window, operand 7, single buffered']
    #allocation14 [shape = 's32[1]{0}', space=sflag, size = 0x4, scoped, tag = 'scoped memory for tpu_custom_call.1']
    #allocation15 [shape = 'u8[32768]{0}', space=vmem, size = 0x8000, scoped, tag = 'output window, operand 0']
    #allocation16 [shape = 'u8[4096]{0}', space=vmem, size = 0x1000, scoped, tag = 'output window, operand 1, single buffered']
    #allocation17 [shape = 's32[1]{0}', space=sflag, size = 0x4, scoped, tag = 'scoped memory for tpu_custom_call.1']
    #allocation18 [shape = 'u8[4096]{0}', space=vmem, size = 0x1000, scoped, tag = 'output window, operand 2, single buffered']
    %16 = vsyncpa [#allocation5], 0
    %s17 = scalar_lea.sflag [#allocation5], 1
    %18 = vsyncpa %s17, 0
    %19 = vsyncpa [#allocation8], 0
    %20 = vsyncpa [#allocation11], 0
    %21 = vsyncpa [#allocation14], 0
    %22 = vsyncpa [#allocation6], 0
    %s23 = scalar_lea.sflag [#allocation6], 1
    %24 = vsyncpa %s23, 0
    %25 = vsyncpa [#allocation17], 0
    loop: start=0, step=1, limit=4
    $region2: #{tpu_custom_call.1} parent=1 // loop_pre_header
      _
    $region3: #{tpu_custom_call.1} parent=1 // loop_header
      %s27 = sphi 0, %s31
      %p28 = scmp.ge.s32.totalorder %s27, 4
      %s37 = sphi 0, %s39
      %s40 = sphi 0, %s37
      %s41 = sphi 0, %s40
      %s57 = sphi 0, %s41
      %s61 = sphi 0, %s61
      %s63 = sphi 0, %s61
      %s64 = sphi 0, %s63
      %s78 = sphi 0, %s64
      %s82 = sphi 0, %s82
      %s84 = sphi 0, %s82
      %s85 = sphi 0, %s84
      %s99 = sphi 0, %s85
      %s103 = sphi 0, %s103
      %s105 = sphi 0, %s103
      %s106 = sphi 0, %s105
      %s120 = sphi 0, %s106
      %s124 = sphi 0, %s124
      %s126 = sphi 0, %s124
      %s127 = sphi 0, %s126
      %s141 = sphi 0, %s127
      %s145 = sphi 0, %s145
      %s147 = sphi 0, %s145
      %s148 = sphi 0, %s147
      %s162 = sphi 0, %s148
      %s166 = sphi 0, %s166
      %s168 = sphi 0, %s166
      %s169 = sphi 0, %s168
      %s183 = sphi 0, %s169
      %s187 = sphi 0, %s187
      %s189 = sphi 0, %s187
      %s190 = sphi 0, %s189
      %s204 = sphi 0, %s190
      %s210 = sphi 0, %s212
      %s213 = sphi 0, %s210
      %s214 = sphi 0, %s213
      %s230 = sphi 0, %s214
      %s234 = sphi 0, %s234
      %s236 = sphi 0, %s234
      %s237 = sphi 0, %s236
      %s251 = sphi 0, %s237
      %s255 = sphi 0, %s255
      %s257 = sphi 0, %s255
      %s258 = sphi 0, %s257
      %s272 = sphi 0, %s258
    $region4: #{tpu_custom_call.1} parent=1 // loop_header_branch
      %30 = sbr.rel (%p28) target = $region8
    $region5: #{tpu_custom_call.1} parent=1 // loop_body
      %s32 = ssub.s32 %s27, 1
      %s33 = ssub.s32 %s27, 2
      %s34 = sadd.s32 %s27, 1
      %s35 = ssub.s32 %s27, %s34
      %p36 = scmp.eq.s32.totalorder %s35, 0
      %s38 = sadd.s32 %s37, 1
      %s39 = scalar_select %p36, %s37, %s38
      %p42 = pneg %p36
      %p43 = scmp.eq.s32.totalorder %s27, 1
      %p44 = por %p42, %p43
      %p45 = scmp.ne.s32.totalorder %s37, %s40
      %p46 = scmp.eq.s32.totalorder %s27, 0
      %p47 = por %p45, %p46
      %p48 = scmp.ne.s32.totalorder %s37, %s40
      %p49 = scmp.eq.s32.totalorder %s32, 1
      %p50 = por %p48, %p49
      %p51 = scmp.ne.s32.totalorder %s40, %s41
      %p52 = scmp.eq.s32.totalorder %s32, 0
      %p53 = por %p51, %p52
      %p54 = scmp.ne.s32.totalorder %s40, %s41
      %p55 = scmp.eq.s32.totalorder %s33, 1
      %p56 = por %p54, %p55
      %p58 = scmp.ne.s32.totalorder %s41, %s57
      %p59 = scmp.eq.s32.totalorder %s33, 0
      %p60 = por %p58, %p59
      %s62 = sadd.s32 %s61, 1
      %p65 = scmp.eq.s32.totalorder %s27, 1
      %p66 = scmp.ne.s32.totalorder %s61, %s63
      %p67 = scmp.eq.s32.totalorder %s27, 0
      %p68 = por %p66, %p67
      %p69 = scmp.ne.s32.totalorder %s61, %s63
      %p70 = scmp.eq.s32.totalorder %s32, 1
      %p71 = por %p69, %p70
      %p72 = scmp.ne.s32.totalorder %s63, %s64
      %p73 = scmp.eq.s32.totalorder %s32, 0
      %p74 = por %p72, %p73
      %p75 = scmp.ne.s32.totalorder %s63, %s64
      %p76 = scmp.eq.s32.totalorder %s33, 1
      %p77 = por %p75, %p76
      %p79 = scmp.ne.s32.totalorder %s64, %s78
      %p80 = scmp.eq.s32.totalorder %s33, 0
      %p81 = por %p79, %p80
      %s83 = sadd.s32 %s82, 1
      %p86 = scmp.eq.s32.totalorder %s27, 1
      %p87 = scmp.ne.s32.totalorder %s82, %s84
      %p88 = scmp.eq.s32.totalorder %s27, 0
      %p89 = por %p87, %p88
      %p90 = scmp.ne.s32.totalorder %s82, %s84
      %p91 = scmp.eq.s32.totalorder %s32, 1
      %p92 = por %p90, %p91
      %p93 = scmp.ne.s32.totalorder %s84, %s85
      %p94 = scmp.eq.s32.totalorder %s32, 0
      %p95 = por %p93, %p94
      %p96 = scmp.ne.s32.totalorder %s84, %s85
      %p97 = scmp.eq.s32.totalorder %s33, 1
      %p98 = por %p96, %p97
      %p100 = scmp.ne.s32.totalorder %s85, %s99
      %p101 = scmp.eq.s32.totalorder %s33, 0
      %p102 = por %p100, %p101
      %s104 = sadd.s32 %s103, 1
      %p107 = scmp.eq.s32.totalorder %s27, 1
      %p108 = scmp.ne.s32.totalorder %s103, %s105
      %p109 = scmp.eq.s32.totalorder %s27, 0
      %p110 = por %p108, %p109
      %p111 = scmp.ne.s32.totalorder %s103, %s105
      %p112 = scmp.eq.s32.totalorder %s32, 1
      %p113 = por %p111, %p112
      %p114 = scmp.ne.s32.totalorder %s105, %s106
      %p115 = scmp.eq.s32.totalorder %s32, 0
      %p116 = por %p114, %p115
      %p117 = scmp.ne.s32.totalorder %s105, %s106
      %p118 = scmp.eq.s32.totalorder %s33, 1
      %p119 = por %p117, %p118
      %p121 = scmp.ne.s32.totalorder %s106, %s120
      %p122 = scmp.eq.s32.totalorder %s33, 0
      %p123 = por %p121, %p122
      %s125 = sadd.s32 %s124, 1
      %p128 = scmp.eq.s32.totalorder %s27, 1
      %p129 = scmp.ne.s32.totalorder %s124, %s126
      %p130 = scmp.eq.s32.totalorder %s27, 0
      %p131 = por %p129, %p130
      %p132 = scmp.ne.s32.totalorder %s124, %s126
      %p133 = scmp.eq.s32.totalorder %s32, 1
      %p134 = por %p132, %p133
      %p135 = scmp.ne.s32.totalorder %s126, %s127
      %p136 = scmp.eq.s32.totalorder %s32, 0
      %p137 = por %p135, %p136
      %p138 = scmp.ne.s32.totalorder %s126, %s127
      %p139 = scmp.eq.s32.totalorder %s33, 1
      %p140 = por %p138, %p139
      %p142 = scmp.ne.s32.totalorder %s127, %s141
      %p143 = scmp.eq.s32.totalorder %s33, 0
      %p144 = por %p142, %p143
      %s146 = sadd.s32 %s145, 1
      %p149 = scmp.eq.s32.totalorder %s27, 1
      %p150 = scmp.ne.s32.totalorder %s145, %s147
      %p151 = scmp.eq.s32.totalorder %s27, 0
      %p152 = por %p150, %p151
      %p153 = scmp.ne.s32.totalorder %s145, %s147
      %p154 = scmp.eq.s32.totalorder %s32, 1
      %p155 = por %p153, %p154
      %p156 = scmp.ne.s32.totalorder %s147, %s148
      %p157 = scmp.eq.s32.totalorder %s32, 0
      %p158 = por %p156, %p157
      %p159 = scmp.ne.s32.totalorder %s147, %s148
      %p160 = scmp.eq.s32.totalorder %s33, 1
      %p161 = por %p159, %p160
      %p163 = scmp.ne.s32.totalorder %s148, %s162
      %p164 = scmp.eq.s32.totalorder %s33, 0
      %p165 = por %p163, %p164
      %s167 = sadd.s32 %s166, 1
      %p170 = scmp.eq.s32.totalorder %s27, 1
      %p171 = scmp.ne.s32.totalorder %s166, %s168
      %p172 = scmp.eq.s32.totalorder %s27, 0
      %p173 = por %p171, %p172
      %p174 = scmp.ne.s32.totalorder %s166, %s168
      %p175 = scmp.eq.s32.totalorder %s32, 1
      %p176 = por %p174, %p175
      %p177 = scmp.ne.s32.totalorder %s168, %s169
      %p178 = scmp.eq.s32.totalorder %s32, 0
      %p179 = por %p177, %p178
      %p180 = scmp.ne.s32.totalorder %s168, %s169
      %p181 = scmp.eq.s32.totalorder %s33, 1
      %p182 = por %p180, %p181
      %p184 = scmp.ne.s32.totalorder %s169, %s183
      %p185 = scmp.eq.s32.totalorder %s33, 0
      %p186 = por %p184, %p185
      %s188 = sadd.s32 %s187, 1
      %p191 = scmp.eq.s32.totalorder %s27, 1
      %p192 = scmp.ne.s32.totalorder %s187, %s189
      %p193 = scmp.eq.s32.totalorder %s27, 0
      %p194 = por %p192, %p193
      %p195 = scmp.ne.s32.totalorder %s187, %s189
      %p196 = scmp.eq.s32.totalorder %s32, 1
      %p197 = por %p195, %p196
      %p198 = scmp.ne.s32.totalorder %s189, %s190
      %p199 = scmp.eq.s32.totalorder %s32, 0
      %p200 = por %p198, %p199
      %p201 = scmp.ne.s32.totalorder %s189, %s190
      %p202 = scmp.eq.s32.totalorder %s33, 1
      %p203 = por %p201, %p202
      %p205 = scmp.ne.s32.totalorder %s190, %s204
      %p206 = scmp.eq.s32.totalorder %s33, 0
      %p207 = por %p205, %p206
      %s208 = ssub.s32 %s27, %s34
      %p209 = scmp.eq.s32.totalorder %s208, 0
      %s211 = sadd.s32 %s210, 1
      %s212 = scalar_select %p209, %s210, %s211
      %p215 = pneg %p209
      %p216 = scmp.eq.s32.totalorder %s27, 1
      %p217 = por %p215, %p216
      %p218 = scmp.ne.s32.totalorder %s210, %s213
      %p219 = scmp.eq.s32.totalorder %s27, 0
      %p220 = por %p218, %p219
      %p221 = scmp.ne.s32.totalorder %s210, %s213
      %p222 = scmp.eq.s32.totalorder %s32, 1
      %p223 = por %p221, %p222
      %p224 = scmp.ne.s32.totalorder %s213, %s214
      %p225 = scmp.eq.s32.totalorder %s32, 0
      %p226 = por %p224, %p225
      %p227 = scmp.ne.s32.totalorder %s213, %s214
      %p228 = scmp.eq.s32.totalorder %s33, 1
      %p229 = por %p227, %p228
      %p231 = scmp.ne.s32.totalorder %s214, %s230
      %p232 = scmp.eq.s32.totalorder %s33, 0
      %p233 = por %p231, %p232
      %s235 = sadd.s32 %s234, 1
      %p238 = scmp.eq.s32.totalorder %s27, 1
      %p239 = scmp.ne.s32.totalorder %s234, %s236
      %p240 = scmp.eq.s32.totalorder %s27, 0
      %p241 = por %p239, %p240
      %p242 = scmp.ne.s32.totalorder %s234, %s236
      %p243 = scmp.eq.s32.totalorder %s32, 1
      %p244 = por %p242, %p243
      %p245 = scmp.ne.s32.totalorder %s236, %s237
      %p246 = scmp.eq.s32.totalorder %s32, 0
      %p247 = por %p245, %p246
      %p248 = scmp.ne.s32.totalorder %s236, %s237
      %p249 = scmp.eq.s32.totalorder %s33, 1
      %p250 = por %p248, %p249
      %p252 = scmp.ne.s32.totalorder %s237, %s251
      %p253 = scmp.eq.s32.totalorder %s33, 0
      %p254 = por %p252, %p253
      %s256 = sadd.s32 %s255, 1
      %p259 = scmp.eq.s32.totalorder %s27, 1
      %p260 = scmp.ne.s32.totalorder %s255, %s257
      %p261 = scmp.eq.s32.totalorder %s27, 0
      %p262 = por %p260, %p261
      %p263 = scmp.ne.s32.totalorder %s255, %s257
      %p264 = scmp.eq.s32.totalorder %s32, 1
      %p265 = por %p263, %p264
      %p266 = scmp.ne.s32.totalorder %s257, %s258
      %p267 = scmp.eq.s32.totalorder %s32, 0
      %p268 = por %p266, %p267
      %p269 = scmp.ne.s32.totalorder %s257, %s258
      %p270 = scmp.eq.s32.totalorder %s33, 1
      %p271 = por %p269, %p270
      %p273 = scmp.ne.s32.totalorder %s258, %s272
      %p274 = scmp.eq.s32.totalorder %s33, 0
      %p275 = por %p273, %p274
      %p276 = scmp.le.s32.totalorder 1, %s27
      %p277 = scmp.lt.s32.totalorder %s27, 3
      %p278 = pnand %p276, %p277
      %p279 = pneg %p278
      // Predicated region
      $region9: #{tpu_custom_call.1} parent=5 // pred_check
        _
      $region10: #{tpu_custom_call.1} parent=5 // pred_check_branch
        %281 = sbr.rel (%p278) target = $region12
      $region11: #{tpu_custom_call.1} parent=5 // pred_region
        %s282 = ssub.s32 %s27, 1
        // Predicated region
        $region13: #{tpu_custom_call.1} parent=11 // pred_check
          %p283 = pneg %p74
        $region14: #{tpu_custom_call.1} parent=11 // pred_check_branch
          %285 = sbr.rel (%p283) target = $region16
        $region15: #{tpu_custom_call.1} parent=11 // pred_region
          %s287 = ssub.s32 4096, 4096
          %288 = vsyncadd [#allocation8], %s287
          %s289 = sshll.u32 [#allocation7], 4
          %s290 = int_to_ptr.vmem [resolvable:$true] %s289
          %295 = dma.hbm_to_vmem [thread:$0]  %s1, 4096, %s290, [#allocation8], 256, 256, 16
        $region16: #{tpu_custom_call.1} parent=11 // pred_fallthru
          _
        // Predicated region
        $region17: #{tpu_custom_call.1} parent=11 // pred_check
          %p296 = pneg %p95
        $region18: #{tpu_custom_call.1} parent=11 // pred_check_branch
          %298 = sbr.rel (%p296) target = $region20
        $region19: #{tpu_custom_call.1} parent=11 // pred_region
          %s300 = ssub.s32 4096, 4096
          %301 = vsyncadd [#allocation8], %s300
          %s302 = sshll.u32 [#allocation9], 4
          %s303 = int_to_ptr.vmem [resolvable:$true] %s302
          %308 = dma.hbm_to_vmem [thread:$0]  %s2, 4096, %s303, [#allocation8], 256, 256, 16
        $region20: #{tpu_custom_call.1} parent=11 // pred_fallthru
          _
        // Predicated region
        $region21: #{tpu_custom_call.1} parent=11 // pred_check
          %p309 = pneg %p116
        $region22: #{tpu_custom_call.1} parent=11 // pred_check_branch
          %311 = sbr.rel (%p309) target = $region24
        $region23: #{tpu_custom_call.1} parent=11 // pred_region
          %s313 = ssub.s32 64, 64
          %314 = vsyncadd [#allocation11], %s313
          %s316 = sshll.u32 [#allocation10], 4
          %s317 = int_to_ptr.vmem [resolvable:$true] %s316
          %319 = dma.hbm_to_vmem [thread:$0]  %s3, 64, %s317, [#allocation11]
        $region24: #{tpu_custom_call.1} parent=11 // pred_fallthru
          _
        // Predicated region
        $region25: #{tpu_custom_call.1} parent=11 // pred_check
          %p320 = pneg %p137
        $region26: #{tpu_custom_call.1} parent=11 // pred_check_branch
          %322 = sbr.rel (%p320) target = $region28
        $region27: #{tpu_custom_call.1} parent=11 // pred_region
          %s324 = ssub.s32 1024, 1024
          %325 = vsyncadd [#allocation11], %s324
          %s326 = sshll.u32 [#allocation12], 4
          %s327 = int_to_ptr.vmem [resolvable:$true] %s326
          %332 = dma.hbm_to_vmem [thread:$0]  %s4, 1024, %s327, [#allocation11], 64, 64, 4
        $region28: #{tpu_custom_call.1} parent=11 // pred_fallthru
          _
        // Predicated region
        $region29: #{tpu_custom_call.1} parent=11 // pred_check
          %p333 = pneg %p158
        $region30: #{tpu_custom_call.1} parent=11 // pred_check_branch
          %335 = sbr.rel (%p333) target = $region32
        $region31: #{tpu_custom_call.1} parent=11 // pred_region
          _
        $region32: #{tpu_custom_call.1} parent=11 // pred_fallthru
          _
        // Predicated region
        $region33: #{tpu_custom_call.1} parent=11 // pred_check
          %p336 = pneg %p179
        $region34: #{tpu_custom_call.1} parent=11 // pred_check_branch
          %338 = sbr.rel (%p336) target = $region36
        $region35: #{tpu_custom_call.1} parent=11 // pred_region
          _
        $region36: #{tpu_custom_call.1} parent=11 // pred_fallthru
          _
        // Predicated region
        $region37: #{tpu_custom_call.1} parent=11 // pred_check
          %p339 = pneg %p200
        $region38: #{tpu_custom_call.1} parent=11 // pred_check_branch
          %341 = sbr.rel (%p339) target = $region40
        $region39: #{tpu_custom_call.1} parent=11 // pred_region
          %s343 = ssub.s32 128, 128
          %344 = vsyncadd [#allocation14], %s343
          %s346 = sshll.u32 [#allocation13], 4
          %s347 = int_to_ptr.vmem [resolvable:$true] %s346
          %349 = dma.hbm_to_vmem [thread:$0]  %s7, 128, %s347, [#allocation14]
        $region40: #{tpu_custom_call.1} parent=11 // pred_fallthru
          _
      $region12: #{tpu_custom_call.1} parent=5 // pred_fallthru
        _
      %p350 = scmp.lt.s32.totalorder %s27, 2
      // Predicated region
      $region41: #{tpu_custom_call.1} parent=5 // pred_check
        %p351 = pneg %p350
      $region42: #{tpu_custom_call.1} parent=5 // pred_check_branch
        %353 = sbr.rel (%p351) target = $region44
      $region43: #{tpu_custom_call.1} parent=5 // pred_region
        // Predicated region
        $region45: #{tpu_custom_call.1} parent=43 // pred_check
          %p354 = pneg %p47
        $region46: #{tpu_custom_call.1} parent=43 // pred_check_branch
          %356 = sbr.rel (%p354) target = $region48
        $region47: #{tpu_custom_call.1} parent=43 // pred_region
          %s357 = sand.u32 %s37, 1
          %s358 = scalar_lea.sflag [#allocation5], %s357
          %s359 = sand.u32 %s37, 1
          %s360 = smul.addr %s359, 16
          %s361 = scalar_lea.vmem [#allocation4], %s360
          %s362 = smul.u32 4, %s27
          %s364 = ssub.s32 256, 256
          %365 = vsyncadd %s358, %s364
          %s366 = smul.addr %s362, 64
          %s367 = scalar_lea.hbm %s0, %s366
          %s368 = sshll.u32 %s361, 4
          %s369 = int_to_ptr.vmem [resolvable:$true] %s368
          %374 = dma.hbm_to_vmem [thread:$0]  %s367, 256, %s369, %s358, 64, 64, 4
        $region48: #{tpu_custom_call.1} parent=43 // pred_fallthru
          _
      $region44: #{tpu_custom_call.1} parent=5 // pred_fallthru
        _
      %p375 = scmp.le.s32.totalorder 1, %s27
      %p376 = scmp.lt.s32.totalorder %s27, 3
      %p377 = pnand %p375, %p376
      %p378 = pneg %p377
      // Predicated region
      $region49: #{tpu_custom_call.1} parent=5 // pred_check
        _
      $region50: #{tpu_custom_call.1} parent=5 // pred_check_branch
        %380 = sbr.rel (%p377) target = $region52
      $region51: #{tpu_custom_call.1} parent=5 // pred_region
        %s381 = ssub.s32 %s27, 1
        %s382 = sand.u32 %s40, 1
        %s383 = scalar_lea.sflag [#allocation5], %s382
        %s384 = sand.u32 %s40, 1
        %s385 = smul.addr %s384, 16
        %s386 = scalar_lea.vmem [#allocation4], %s385
        // Predicated region
        $region53: #{tpu_custom_call.1} parent=51 // pred_check
          %p387 = pneg %p53
        $region54: #{tpu_custom_call.1} parent=51 // pred_check_branch
          %389 = sbr.rel (%p387) target = $region56
        $region55: #{tpu_custom_call.1} parent=51 // pred_region
          %390 = dma.done %s383, 256
        $region56: #{tpu_custom_call.1} parent=51 // pred_fallthru
          _
        // Predicated region
        $region57: #{tpu_custom_call.1} parent=51 // pred_check
          %p391 = pneg %p74
        $region58: #{tpu_custom_call.1} parent=51 // pred_check_branch
          %393 = sbr.rel (%p391) target = $region60
        $region59: #{tpu_custom_call.1} parent=51 // pred_region
          %394 = dma.done [#allocation8], 4096
        $region60: #{tpu_custom_call.1} parent=51 // pred_fallthru
          _
        // Predicated region
        $region61: #{tpu_custom_call.1} parent=51 // pred_check
          %p395 = pneg %p95
        $region62: #{tpu_custom_call.1} parent=51 // pred_check_branch
          %397 = sbr.rel (%p395) target = $region64
        $region63: #{tpu_custom_call.1} parent=51 // pred_region
          %398 = dma.done [#allocation8], 4096
        $region64: #{tpu_custom_call.1} parent=51 // pred_fallthru
          _
        // Predicated region
        $region65: #{tpu_custom_call.1} parent=51 // pred_check
          %p399 = pneg %p116
        $region66: #{tpu_custom_call.1} parent=51 // pred_check_branch
          %401 = sbr.rel (%p399) target = $region68
        $region67: #{tpu_custom_call.1} parent=51 // pred_region
          %402 = dma.done [#allocation11], 64
        $region68: #{tpu_custom_call.1} parent=51 // pred_fallthru
          _
        // Predicated region
        $region69: #{tpu_custom_call.1} parent=51 // pred_check
          %p403 = pneg %p137
        $region70: #{tpu_custom_call.1} parent=51 // pred_check_branch
          %405 = sbr.rel (%p403) target = $region72
        $region71: #{tpu_custom_call.1} parent=51 // pred_region
          %406 = dma.done [#allocation11], 1024
        $region72: #{tpu_custom_call.1} parent=51 // pred_fallthru
          _
        // Predicated region
        $region73: #{tpu_custom_call.1} parent=51 // pred_check
          %p407 = pneg %p200
        $region74: #{tpu_custom_call.1} parent=51 // pred_check_branch
          %409 = sbr.rel (%p407) target = $region76
        $region75: #{tpu_custom_call.1} parent=51 // pred_region
          %410 = dma.done [#allocation14], 128
        $region76: #{tpu_custom_call.1} parent=51 // pred_fallthru
          _
        %s411 = sand.u32 %s40, 1
        %s412 = scalar_lea.sflag [#allocation5], %s411
        %s413 = sand.u32 %s40, 1
        %s414 = smul.addr %s413, 16
        %s415 = scalar_lea.vmem [#allocation4], %s414
        %p416 = pneg %p53
        %p417 = pneg %p50
        %p418 = pneg %p74
        %p419 = pneg %p71
        %p420 = pneg %p95
        %p421 = pneg %p92
        %p422 = pneg %p116
        %p423 = pneg %p113
        %p424 = pneg %p137
        %p425 = pneg %p134
        %p426 = pneg %p158
        %p427 = pneg %p155
        %p428 = pneg %p179
        %p429 = pneg %p176
        %p430 = pneg %p200
        %p431 = pneg %p197
        %p432 = pneg %p226
        %p433 = pneg %p223
        %s434 = sand.u32 %s213, 1
        %s435 = scalar_lea.sflag [#allocation6], %s434
        %s436 = sand.u32 %s213, 1
        %s437 = smul.addr %s436, 32
        %s438 = scalar_lea.vmem [#allocation15], %s437
        %p439 = pneg %p247
        %p440 = pneg %p244
        %p441 = pneg %p268
        %p442 = pneg %p265
        %s443 = smul.u32 4, %s32
        %s444 = smul.u32 4, %s32
        %p446 = scmp.eq.s32.totalorder %s32, 0
        // Predicated region
        $region77: #{tpu_custom_call.1} parent=51 // pred_check
          %p447 = pneg %p446
        $region78: #{tpu_custom_call.1} parent=51 // pred_check_branch
          %449 = sbr.rel (%p447) target = $region80
        $region79: #{tpu_custom_call.1} parent=51 // pred_region
          %v450 = vld [vmem:[%s6] sm:$0xff]
          %451 = vst [vmem:[#allocation16] sm:$0xff] %v450
          %v452 = vld [vmem:[#allocation13] sm:$0xff]
          %453 = vst [vmem:[#allocation18] sm:$0xff] %v452
        $region80: #{tpu_custom_call.1} parent=51 // pred_fallthru
          _
        %v454 = vld [vmem:[%s386] sm:$0xf]
        %v455 = vld [vmem:[%s386 + $0x4] sm:$0xf]
        %v456 = vld [vmem:[%s386 + $0x8] sm:$0xf]
        %v457 = vld [vmem:[%s386 + $0xc] sm:$0xf]
        %v458 = vld [vmem:[#allocation7] sm:$0xff]
        %v459 = vld [vmem:[#allocation7 + $0x8] sm:$0xff]
        %v460 = vld [vmem:[#allocation7 + $0x10] sm:$0xff]
        %v461 = vld [vmem:[#allocation7 + $0x18] sm:$0xff]
        %v462 = vld [vmem:[#allocation7 + $0x20] sm:$0xff]
        %v463 = vld [vmem:[#allocation7 + $0x28] sm:$0xff]
        %v464 = vld [vmem:[#allocation7 + $0x30] sm:$0xff]
        %v465 = vld [vmem:[#allocation7 + $0x38] sm:$0xff]
        %v466 = vld [vmem:[#allocation7 + $0x40] sm:$0xff]
        %v467 = vld [vmem:[#allocation7 + $0x48] sm:$0xff]
        %v468 = vld [vmem:[#allocation7 + $0x50] sm:$0xff]
        %v469 = vld [vmem:[#allocation7 + $0x58] sm:$0xff]
        %v470 = vld [vmem:[#allocation7 + $0x60] sm:$0xff]
        %v471 = vld [vmem:[#allocation7 + $0x68] sm:$0xff]
        %v472 = vld [vmem:[#allocation7 + $0x70] sm:$0xff]
        %v473 = vld [vmem:[#allocation7 + $0x78] sm:$0xff]
        %v474 = vld [vmem:[#allocation7 + $0x80] sm:$0xff]
        %v475 = vld [vmem:[#allocation7 + $0x88] sm:$0xff]
        %v476 = vld [vmem:[#allocation7 + $0x90] sm:$0xff]
        %v477 = vld [vmem:[#allocation7 + $0x98] sm:$0xff]
        %v478 = vld [vmem:[#allocation7 + $0xa0] sm:$0xff]
        %v479 = vld [vmem:[#allocation7 + $0xa8] sm:$0xff]
        %v480 = vld [vmem:[#allocation7 + $0xb0] sm:$0xff]
        %v481 = vld [vmem:[#allocation7 + $0xb8] sm:$0xff]
        %v482 = vld [vmem:[#allocation7 + $0xc0] sm:$0xff]
        %v483 = vld [vmem:[#allocation7 + $0xc8] sm:$0xff]
        %v484 = vld [vmem:[#allocation7 + $0xd0] sm:$0xff]
        %v485 = vld [vmem:[#allocation7 + $0xd8] sm:$0xff]
        %v486 = vld [vmem:[#allocation7 + $0xe0] sm:$0xff]
        %v487 = vld [vmem:[#allocation7 + $0xe8] sm:$0xff]
        %v488 = vld [vmem:[#allocation7 + $0xf0] sm:$0xff]
        %v489 = vld [vmem:[#allocation7 + $0xf8] sm:$0xff]
        %v490 = vld [vmem:[#allocation10] sm:$0xf]
        %v492 = vlaneseq
        %v493 = vshrl.u32 %v492, 7
        %v494 = vsub.s32 0, %v493
        %v495 = vrot.slane %v490, %v494
        %v496 = vlaneseq
        %v497 = vshrl.u32 %v496, 7
        %v498 = vsub.s32 1, %v497
        %v499 = vrot.slane %v490, %v498
        %v500 = vlaneseq
        %v501 = vshrl.u32 %v500, 7
        %v502 = vsub.s32 2, %v501
        %v503 = vrot.slane %v490, %v502
        %v504 = vlaneseq
        %v505 = vshrl.u32 %v504, 7
        %v506 = vsub.s32 3, %v505
        %v507 = vrot.slane %v490, %v506
        %v516 = vunpack.c.l.b16 %v454
        %v517 = vunpack.c.l.b16 %v455
        %v518 = vunpack.c.l.b16 %v456
        %v519 = vunpack.c.l.b16 %v457
        %v520 = vpack.c.b16 %v517, %v516
        %v521 = vpack.c.b16 %v519, %v518
        %v556 = vunpack.c.l.b16 %v458
        %v557 = vunpack.c.h.b16 %v458
        %v558 = vunpack.c.l.b16 %v459
        %v559 = vunpack.c.h.b16 %v459
        %v560 = vunpack.c.l.b16 %v460
        %v561 = vunpack.c.h.b16 %v460
        %v562 = vunpack.c.l.b16 %v461
        %v563 = vunpack.c.h.b16 %v461
        %v564 = vunpack.c.l.b16 %v462
        %v565 = vunpack.c.h.b16 %v462
        %v566 = vunpack.c.l.b16 %v463
        %v567 = vunpack.c.h.b16 %v463
        %v568 = vunpack.c.l.b16 %v464
        %v569 = vunpack.c.h.b16 %v464
        %v570 = vunpack.c.l.b16 %v465
        %v571 = vunpack.c.h.b16 %v465
        %v572 = vunpack.c.l.b16 %v466
        %v573 = vunpack.c.h.b16 %v466
        %v574 = vunpack.c.l.b16 %v467
        %v575 = vunpack.c.h.b16 %v467
        %v576 = vunpack.c.l.b16 %v468
        %v577 = vunpack.c.h.b16 %v468
        %v578 = vunpack.c.l.b16 %v469
        %v579 = vunpack.c.h.b16 %v469
        %v580 = vunpack.c.l.b16 %v470
        %v581 = vunpack.c.h.b16 %v470
        %v582 = vunpack.c.l.b16 %v471
        %v583 = vunpack.c.h.b16 %v471
        %v584 = vunpack.c.l.b16 %v472
        %v585 = vunpack.c.h.b16 %v472
        %v586 = vunpack.c.l.b16 %v473
        %v587 = vunpack.c.h.b16 %v473
        %v588 = vunpack.c.l.b16 %v474
        %v589 = vunpack.c.h.b16 %v474
        %v590 = vunpack.c.l.b16 %v475
        %v591 = vunpack.c.h.b16 %v475
        %v592 = vunpack.c.l.b16 %v476
        %v593 = vunpack.c.h.b16 %v476
        %v594 = vunpack.c.l.b16 %v477
        %v595 = vunpack.c.h.b16 %v477
        %v596 = vunpack.c.l.b16 %v478
        %v597 = vunpack.c.h.b16 %v478
        %v598 = vunpack.c.l.b16 %v479
        %v599 = vunpack.c.h.b16 %v479
        %v600 = vunpack.c.l.b16 %v480
        %v601 = vunpack.c.h.b16 %v480
        %v602 = vunpack.c.l.b16 %v481
        %v603 = vunpack.c.h.b16 %v481
        %v604 = vunpack.c.l.b16 %v482
        %v605 = vunpack.c.h.b16 %v482
        %v606 = vunpack.c.l.b16 %v483
        %v607 = vunpack.c.h.b16 %v483
        %v608 = vunpack.c.l.b16 %v484
        %v609 = vunpack.c.h.b16 %v484
        %v610 = vunpack.c.l.b16 %v485
        %v611 = vunpack.c.h.b16 %v485
        %v612 = vunpack.c.l.b16 %v486
        %v613 = vunpack.c.h.b16 %v486
        %v614 = vunpack.c.l.b16 %v487
        %v615 = vunpack.c.h.b16 %v487
        %v616 = vunpack.c.l.b16 %v488
        %v617 = vunpack.c.h.b16 %v488
        %v618 = vunpack.c.l.b16 %v489
        %v619 = vunpack.c.h.b16 %v489
        %v620 = vpack.c.b16 %v560, %v556
        %v621 = vpack.c.b16 %v561, %v557
        %v622 = vpack.c.b16 %v562, %v558
        %v623 = vpack.c.b16 %v563, %v559
        %v624 = vpack.c.b16 %v568, %v564
        %v625 = vpack.c.b16 %v569, %v565
        %v626 = vpack.c.b16 %v570, %v566
        %v627 = vpack.c.b16 %v571, %v567
        %v628 = vpack.c.b16 %v576, %v572
        %v629 = vpack.c.b16 %v577, %v573
        %v630 = vpack.c.b16 %v578, %v574
        %v631 = vpack.c.b16 %v579, %v575
        %v632 = vpack.c.b16 %v584, %v580
        %v633 = vpack.c.b16 %v585, %v581
        %v634 = vpack.c.b16 %v586, %v582
        %v635 = vpack.c.b16 %v587, %v583
        %v636 = vpack.c.b16 %v592, %v588
        %v637 = vpack.c.b16 %v593, %v589
        %v638 = vpack.c.b16 %v594, %v590
        %v639 = vpack.c.b16 %v595, %v591
        %v640 = vpack.c.b16 %v600, %v596
        %v641 = vpack.c.b16 %v601, %v597
        %v642 = vpack.c.b16 %v602, %v598
        %v643 = vpack.c.b16 %v603, %v599
        %v644 = vpack.c.b16 %v608, %v604
        %v645 = vpack.c.b16 %v609, %v605
        %v646 = vpack.c.b16 %v610, %v606
        %v647 = vpack.c.b16 %v611, %v607
        %v648 = vpack.c.b16 %v616, %v612
        %v649 = vpack.c.b16 %v617, %v613
        %v650 = vpack.c.b16 %v618, %v614
        %v651 = vpack.c.b16 %v619, %v615
        %684 = vmatprep.subr.bf16.mxu0 %v649
        %685 = vmatpush1.bf16.msra.mxu0 %v648
        %686 = vmatprep.subr.bf16.mxu0 %v645
        %687 = vmatpush1.bf16.msra.mxu0 %v644
        %688 = vmatprep.subr.bf16.mxu0 %v641
        %689 = vmatpush1.bf16.msra.mxu0 %v640
        %690 = vmatprep.subr.bf16.mxu0 %v637
        %691 = vmatpush1.bf16.msra.mxu0 %v636
        %692 = vmatprep.subr.bf16.mxu0 %v633
        %693 = vmatpush1.bf16.msra.mxu0 %v632
        %694 = vmatprep.subr.bf16.mxu0 %v629
        %695 = vmatpush1.bf16.msra.mxu0 %v628
        %696 = vmatprep.subr.bf16.mxu0 %v625
        %697 = vmatpush1.bf16.msra.mxu0 %v624
        %698 = vmatprep.subr.bf16.mxu0 %v621
        %699 = vmatpush1.bf16.msra.mxu0 %v620
        %700 = vmatprep.subr.bf16.mxu0 0
        %701 = vmatpush2.bf16.msra.mxu0 0
        %702 = vmatprep.subr.bf16.mxu0 0
        %703 = vmatpush2.bf16.msra.mxu0 0
        %704 = vmatprep.subr.bf16.mxu0 0
        %705 = vmatpush2.bf16.msra.mxu0 0
        %706 = vmatprep.subr.bf16.mxu0 0
        %707 = vmatpush2.bf16.msra.mxu0 0
        %708 = vmatprep.subr.bf16.mxu0 0
        %709 = vmatpush2.bf16.msra.mxu0 0
        %710 = vmatprep.subr.bf16.mxu0 0
        %711 = vmatpush2.bf16.msra.mxu0 0
        %712 = vmatprep.subr.bf16.mxu0 0
        %713 = vmatpush2.bf16.msra.mxu0 0
        %714 = vmatprep.subr.bf16.mxu0 0
        %715 = vmatpush2.bf16.msra.mxu0 0
        %716 = vmatprep.mubr.bf16.mxu0 0
        %717 = vmatmul.mubr.bf16.gmra.mxu0 %v520
        %v718 = vpop.f32.mrf.mxu0
        %v719 = vadd.f32 %v495, %v718
        %v720 = vpop.f32.mrf.mxu0
        %v721 = vadd.f32 %v499, %v720
        %v722 = vpop.f32.mrf.mxu0
        %v723 = vadd.f32 %v495, %v722
        %v724 = vpop.f32.mrf.mxu0
        %v725 = vadd.f32 %v499, %v724
        %726 = vmatprep.mubr.bf16.mxu0 0
        %727 = vmatmul.mubr.bf16.gmra.mxu0 %v521
        %v728 = vpop.f32.mrf.mxu0
        %v729 = vadd.f32 %v495, %v728
        %v730 = vpop.f32.mrf.mxu0
        %v731 = vadd.f32 %v499, %v730
        %v732 = vpop.f32.mrf.mxu0
        %v733 = vadd.f32 %v495, %v732
        %v734 = vpop.f32.mrf.mxu0
        %v735 = vadd.f32 %v499, %v734
        %736 = vdwg.mxu0
        %737 = vmatprep.subr.bf16.mxu0 %v651
        %738 = vmatpush1.bf16.msra.mxu0 %v650
        %739 = vmatprep.subr.bf16.mxu0 %v647
        %740 = vmatpush1.bf16.msra.mxu0 %v646
        %741 = vmatprep.subr.bf16.mxu0 %v643
        %742 = vmatpush1.bf16.msra.mxu0 %v642
        %743 = vmatprep.subr.bf16.mxu0 %v639
        %744 = vmatpush1.bf16.msra.mxu0 %v638
        %745 = vmatprep.subr.bf16.mxu0 %v635
        %746 = vmatpush1.bf16.msra.mxu0 %v634
        %747 = vmatprep.subr.bf16.mxu0 %v631
        %748 = vmatpush1.bf16.msra.mxu0 %v630
        %749 = vmatprep.subr.bf16.mxu0 %v627
        %750 = vmatpush1.bf16.msra.mxu0 %v626
        %751 = vmatprep.subr.bf16.mxu0 %v623
        %752 = vmatpush1.bf16.msra.mxu0 %v622
        %753 = vmatprep.subr.bf16.mxu0 0
        %754 = vmatpush2.bf16.msra.mxu0 0
        %755 = vmatprep.subr.bf16.mxu0 0
        %756 = vmatpush2.bf16.msra.mxu0 0
        %757 = vmatprep.subr.bf16.mxu0 0
        %758 = vmatpush2.bf16.msra.mxu0 0
        %759 = vmatprep.subr.bf16.mxu0 0
        %760 = vmatpush2.bf16.msra.mxu0 0
        %761 = vmatprep.subr.bf16.mxu0 0
        %762 = vmatpush2.bf16.msra.mxu0 0
        %763 = vmatprep.subr.bf16.mxu0 0
        %764 = vmatpush2.bf16.msra.mxu0 0
        %765 = vmatprep.subr.bf16.mxu0 0
        %766 = vmatpush2.bf16.msra.mxu0 0
        %767 = vmatprep.subr.bf16.mxu0 0
        %768 = vmatpush2.bf16.msra.mxu0 0
        %769 = vmatprep.mubr.bf16.mxu0 0
        %770 = vmatmul.mubr.bf16.gmra.mxu0 %v520
        %v771 = vpop.f32.mrf.mxu0
        %v772 = vadd.f32 %v503, %v771
        %v773 = vpop.f32.mrf.mxu0
        %v774 = vadd.f32 %v507, %v773
        %v775 = vpop.f32.mrf.mxu0
        %v776 = vadd.f32 %v503, %v775
        %v777 = vpop.f32.mrf.mxu0
        %v778 = vadd.f32 %v507, %v777
        %779 = vmatprep.mubr.bf16.mxu0 0
        %780 = vmatmul.mubr.bf16.gmra.mxu0 %v521
        %v781 = vpop.f32.mrf.mxu0
        %v782 = vadd.f32 %v503, %v781
        %v783 = vpop.f32.mrf.mxu0
        %v784 = vadd.f32 %v507, %v783
        %v785 = vpop.f32.mrf.mxu0
        %v786 = vadd.f32 %v503, %v785
        %v787 = vpop.f32.mrf.mxu0
        %v788 = vadd.f32 %v507, %v787
        %789 = vdwg.mxu0
        %790 = vst [vmem:[#allocation2] sm:$0xff] %v719
        %791 = vst [vmem:[#allocation2 + $0x8] sm:$0xff] %v721
        %792 = vst [vmem:[#allocation2 + $0x10] sm:$0xff] %v772
        %793 = vst [vmem:[#allocation2 + $0x18] sm:$0xff] %v774
        %794 = vst [vmem:[#allocation2 + $0x20] sm:$0xff] %v723
        %795 = vst [vmem:[#allocation2 + $0x28] sm:$0xff] %v725
        %796 = vst [vmem:[#allocation2 + $0x30] sm:$0xff] %v776
        %797 = vst [vmem:[#allocation2 + $0x38] sm:$0xff] %v778
        %798 = vst [vmem:[#allocation2 + $0x40] sm:$0xff] %v729
        %799 = vst [vmem:[#allocation2 + $0x48] sm:$0xff] %v731
        %800 = vst [vmem:[#allocation2 + $0x50] sm:$0xff] %v782
        %801 = vst [vmem:[#allocation2 + $0x58] sm:$0xff] %v784
        %802 = vst [vmem:[#allocation2 + $0x60] sm:$0xff] %v733
        %803 = vst [vmem:[#allocation2 + $0x68] sm:$0xff] %v735
        %804 = vst [vmem:[#allocation2 + $0x70] sm:$0xff] %v786
        %805 = vst [vmem:[#allocation2 + $0x78] sm:$0xff] %v788
        %v806 = vld [vmem:[#allocation16] sm:$0xff]
        %v807 = vld [vmem:[#allocation18] sm:$0xff]
        %v808 = vld [vmem:[#allocation2] sm:$0xff]
        %v809 = vld [vmem:[#allocation2 + $0x8] sm:$0xff]
        %v810 = vld [vmem:[#allocation2 + $0x10] sm:$0xff]
        %v811 = vld [vmem:[#allocation2 + $0x18] sm:$0xff]
        %v812 = vpack.c.bf16 %v806, %v806
        %v813 = vld [vmem:[#allocation9] sm:$0xff]
        %v814 = vld [vmem:[#allocation9 + $0x8] sm:$0xff]
        %v815 = vld [vmem:[#allocation9 + $0x10] sm:$0xff]
        %v816 = vld [vmem:[#allocation9 + $0x18] sm:$0xff]
        %v817 = vld [vmem:[#allocation9 + $0x20] sm:$0xff]
        %v818 = vld [vmem:[#allocation9 + $0x28] sm:$0xff]
        %v819 = vld [vmem:[#allocation9 + $0x30] sm:$0xff]
        %v820 = vld [vmem:[#allocation9 + $0x38] sm:$0xff]
        %v821 = vld [vmem:[#allocation9 + $0x40] sm:$0xff]
        %v822 = vld [vmem:[#allocation9 + $0x48] sm:$0xff]
        %v823 = vld [vmem:[#allocation9 + $0x50] sm:$0xff]
        %v824 = vld [vmem:[#allocation9 + $0x58] sm:$0xff]
        %v825 = vld [vmem:[#allocation9 + $0x60] sm:$0xff]
        %v826 = vld [vmem:[#allocation9 + $0x68] sm:$0xff]
        %v827 = vld [vmem:[#allocation9 + $0x70] sm:$0xff]
        %v828 = vld [vmem:[#allocation9 + $0x78] sm:$0xff]
        %v829 = vld [vmem:[#allocation9 + $0x80] sm:$0xff]
        %v830 = vld [vmem:[#allocation9 + $0x88] sm:$0xff]
        %v831 = vld [vmem:[#allocation9 + $0x90] sm:$0xff]
        %v832 = vld [vmem:[#allocation9 + $0x98] sm:$0xff]
        %v833 = vld [vmem:[#allocation9 + $0xa0] sm:$0xff]
        %v834 = vld [vmem:[#allocation9 + $0xa8] sm:$0xff]
        %v835 = vld [vmem:[#allocation9 + $0xb0] sm:$0xff]
        %v836 = vld [vmem:[#allocation9 + $0xb8] sm:$0xff]
        %v837 = vld [vmem:[#allocation9 + $0xc0] sm:$0xff]
        %v838 = vld [vmem:[#allocation9 + $0xc8] sm:$0xff]
        %v839 = vld [vmem:[#allocation9 + $0xd0] sm:$0xff]
        %v840 = vld [vmem:[#allocation9 + $0xd8] sm:$0xff]
        %v841 = vld [vmem:[#allocation9 + $0xe0] sm:$0xff]
        %v842 = vld [vmem:[#allocation9 + $0xe8] sm:$0xff]
        %v843 = vld [vmem:[#allocation9 + $0xf0] sm:$0xff]
        %v844 = vld [vmem:[#allocation9 + $0xf8] sm:$0xff]
        %v877 = vunpack.c.l.b16 %v813
        %v878 = vunpack.c.h.b16 %v813
        %v879 = vunpack.c.l.b16 %v814
        %v880 = vunpack.c.h.b16 %v814
        %v881 = vunpack.c.l.b16 %v815
        %v882 = vunpack.c.h.b16 %v815
        %v883 = vunpack.c.l.b16 %v816
        %v884 = vunpack.c.h.b16 %v816
        %v885 = vunpack.c.l.b16 %v817
        %v886 = vunpack.c.h.b16 %v817
        %v887 = vunpack.c.l.b16 %v818
        %v888 = vunpack.c.h.b16 %v818
        %v889 = vunpack.c.l.b16 %v819
        %v890 = vunpack.c.h.b16 %v819
        %v891 = vunpack.c.l.b16 %v820
        %v892 = vunpack.c.h.b16 %v820
        %v893 = vunpack.c.l.b16 %v821
        %v894 = vunpack.c.h.b16 %v821
        %v895 = vunpack.c.l.b16 %v822
        %v896 = vunpack.c.h.b16 %v822
        %v897 = vunpack.c.l.b16 %v823
        %v898 = vunpack.c.h.b16 %v823
        %v899 = vunpack.c.l.b16 %v824
        %v900 = vunpack.c.h.b16 %v824
        %v901 = vunpack.c.l.b16 %v825
        %v902 = vunpack.c.h.b16 %v825
        %v903 = vunpack.c.l.b16 %v826
        %v904 = vunpack.c.h.b16 %v826
        %v905 = vunpack.c.l.b16 %v827
        %v906 = vunpack.c.h.b16 %v827
        %v907 = vunpack.c.l.b16 %v828
        %v908 = vunpack.c.h.b16 %v828
        %v909 = vunpack.c.l.b16 %v829
        %v910 = vunpack.c.h.b16 %v829
        %v911 = vunpack.c.l.b16 %v830
        %v912 = vunpack.c.h.b16 %v830
        %v913 = vunpack.c.l.b16 %v831
        %v914 = vunpack.c.h.b16 %v831
        %v915 = vunpack.c.l.b16 %v832
        %v916 = vunpack.c.h.b16 %v832
        %v917 = vunpack.c.l.b16 %v833
        %v918 = vunpack.c.h.b16 %v833
        %v919 = vunpack.c.l.b16 %v834
        %v920 = vunpack.c.h.b16 %v834
        %v921 = vunpack.c.l.b16 %v835
        %v922 = vunpack.c.h.b16 %v835
        %v923 = vunpack.c.l.b16 %v836
        %v924 = vunpack.c.h.b16 %v836
        %v925 = vunpack.c.l.b16 %v837
        %v926 = vunpack.c.h.b16 %v837
        %v927 = vunpack.c.l.b16 %v838
        %v928 = vunpack.c.h.b16 %v838
        %v929 = vunpack.c.l.b16 %v839
        %v930 = vunpack.c.h.b16 %v839
        %v931 = vunpack.c.l.b16 %v840
        %v932 = vunpack.c.h.b16 %v840
        %v933 = vunpack.c.l.b16 %v841
        %v934 = vunpack.c.h.b16 %v841
        %v935 = vunpack.c.l.b16 %v842
        %v936 = vunpack.c.h.b16 %v842
        %v937 = vunpack.c.l.b16 %v843
        %v938 = vunpack.c.h.b16 %v843
        %v939 = vunpack.c.l.b16 %v844
        %v940 = vunpack.c.h.b16 %v844
        %v941 = vpack.c.b16 %v881, %v877
        %v942 = vpack.c.b16 %v882, %v878
        %v943 = vpack.c.b16 %v883, %v879
        %v944 = vpack.c.b16 %v884, %v880
        %v945 = vpack.c.b16 %v889, %v885
        %v946 = vpack.c.b16 %v890, %v886
        %v947 = vpack.c.b16 %v891, %v887
        %v948 = vpack.c.b16 %v892, %v888
        %v949 = vpack.c.b16 %v897, %v893
        %v950 = vpack.c.b16 %v898, %v894
        %v951 = vpack.c.b16 %v899, %v895
        %v952 = vpack.c.b16 %v900, %v896
        %v953 = vpack.c.b16 %v905, %v901
        %v954 = vpack.c.b16 %v906, %v902
        %v955 = vpack.c.b16 %v907, %v903
        %v956 = vpack.c.b16 %v908, %v904
        %v957 = vpack.c.b16 %v913, %v909
        %v958 = vpack.c.b16 %v914, %v910
        %v959 = vpack.c.b16 %v915, %v911
        %v960 = vpack.c.b16 %v916, %v912
        %v961 = vpack.c.b16 %v921, %v917
        %v962 = vpack.c.b16 %v922, %v918
        %v963 = vpack.c.b16 %v923, %v919
        %v964 = vpack.c.b16 %v924, %v920
        %v965 = vpack.c.b16 %v929, %v925
        %v966 = vpack.c.b16 %v930, %v926
        %v967 = vpack.c.b16 %v931, %v927
        %v968 = vpack.c.b16 %v932, %v928
        %v969 = vpack.c.b16 %v937, %v933
        %v970 = vpack.c.b16 %v938, %v934
        %v971 = vpack.c.b16 %v939, %v935
        %v972 = vpack.c.b16 %v940, %v936
        %1005 = vmatprep.subr.bf16.mxu0 %v970
        %1006 = vmatpush1.bf16.msra.mxu0 %v969
        %1007 = vmatprep.subr.bf16.mxu0 %v966
        %1008 = vmatpush1.bf16.msra.mxu0 %v965
        %1009 = vmatprep.subr.bf16.mxu0 %v962
        %1010 = vmatpush1.bf16.msra.mxu0 %v961
        %1011 = vmatprep.subr.bf16.mxu0 %v958
        %1012 = vmatpush1.bf16.msra.mxu0 %v957
        %1013 = vmatprep.subr.bf16.mxu0 %v954
        %1014 = vmatpush1.bf16.msra.mxu0 %v953
        %1015 = vmatprep.subr.bf16.mxu0 %v950
        %1016 = vmatpush1.bf16.msra.mxu0 %v949
        %1017 = vmatprep.subr.bf16.mxu0 %v946
        %1018 = vmatpush1.bf16.msra.mxu0 %v945
        %1019 = vmatprep.subr.bf16.mxu0 %v942
        %1020 = vmatpush1.bf16.msra.mxu0 %v941
        %1021 = vmatprep.subr.bf16.mxu0 0
        %1022 = vmatpush2.bf16.msra.mxu0 0
        %1023 = vmatprep.subr.bf16.mxu0 0
        %1024 = vmatpush2.bf16.msra.mxu0 0
        %1025 = vmatprep.subr.bf16.mxu0 0
        %1026 = vmatpush2.bf16.msra.mxu0 0
        %1027 = vmatprep.subr.bf16.mxu0 0
        %1028 = vmatpush2.bf16.msra.mxu0 0
        %1029 = vmatprep.subr.bf16.mxu0 0
        %1030 = vmatpush2.bf16.msra.mxu0 0
        %1031 = vmatprep.subr.bf16.mxu0 0
        %1032 = vmatpush2.bf16.msra.mxu0 0
        %1033 = vmatprep.subr.bf16.mxu0 0
        %1034 = vmatpush2.bf16.msra.mxu0 0
        %1035 = vmatprep.subr.bf16.mxu0 0
        %1036 = vmatpush2.bf16.msra.mxu0 0
        %1037 = vmatprep.mubr.bf16.mxu0 0
        %1038 = vmatmul.mubr.bf16.gmra.mxu0 %v812
        %v1039 = vpop.f32.mrf.mxu0
        %v1040 = vadd.f32 0.0, %v1039
        %v1041 = vpop.f32.mrf.mxu0
        %v1042 = vadd.f32 0.0, %v1041
        %v1043 = vpop.f32.mrf.mxu0
        %v1044 = vpop.f32.mrf.mxu0
        %1045 = vdwg.mxu0
        %1046 = vmatprep.subr.bf16.mxu0 %v972
        %1047 = vmatpush1.bf16.msra.mxu0 %v971
        %1048 = vmatprep.subr.bf16.mxu0 %v968
        %1049 = vmatpush1.bf16.msra.mxu0 %v967
        %1050 = vmatprep.subr.bf16.mxu0 %v964
        %1051 = vmatpush1.bf16.msra.mxu0 %v963
        %1052 = vmatprep.subr.bf16.mxu0 %v960
        %1053 = vmatpush1.bf16.msra.mxu0 %v959
        %1054 = vmatprep.subr.bf16.mxu0 %v956
        %1055 = vmatpush1.bf16.msra.mxu0 %v955
        %1056 = vmatprep.subr.bf16.mxu0 %v952
        %1057 = vmatpush1.bf16.msra.mxu0 %v951
        %1058 = vmatprep.subr.bf16.mxu0 %v948
        %1059 = vmatpush1.bf16.msra.mxu0 %v947
        %1060 = vmatprep.subr.bf16.mxu0 %v944
        %1061 = vmatpush1.bf16.msra.mxu0 %v943
        %1062 = vmatprep.subr.bf16.mxu0 0
        %1063 = vmatpush2.bf16.msra.mxu0 0
        %1064 = vmatprep.subr.bf16.mxu0 0
        %1065 = vmatpush2.bf16.msra.mxu0 0
        %1066 = vmatprep.subr.bf16.mxu0 0
        %1067 = vmatpush2.bf16.msra.mxu0 0
        %1068 = vmatprep.subr.bf16.mxu0 0
        %1069 = vmatpush2.bf16.msra.mxu0 0
        %1070 = vmatprep.subr.bf16.mxu0 0
        %1071 = vmatpush2.bf16.msra.mxu0 0
        %1072 = vmatprep.subr.bf16.mxu0 0
        %1073 = vmatpush2.bf16.msra.mxu0 0
        %1074 = vmatprep.subr.bf16.mxu0 0
        %1075 = vmatpush2.bf16.msra.mxu0 0
        %1076 = vmatprep.subr.bf16.mxu0 0
        %1077 = vmatpush2.bf16.msra.mxu0 0
        %1078 = vmatprep.mubr.bf16.mxu0 0
        %1079 = vmatmul.mubr.bf16.gmra.mxu0 %v812
        %v1080 = vpop.f32.mrf.mxu0
        %v1081 = vadd.f32 0.0, %v1080
        %v1082 = vpop.f32.mrf.mxu0
        %v1083 = vadd.f32 0.0, %v1082
        %v1084 = vpop.f32.mrf.mxu0
        %v1085 = vpop.f32.mrf.mxu0
        %1086 = vdwg.mxu0
        %v1087 = vadd.f32 %v808, %v1040
        %v1088 = vadd.f32 %v809, %v1042
        %v1089 = vadd.f32 %v810, %v1081
        %v1090 = vadd.f32 %v811, %v1083
        %v1091 = vxor.u32 %v1087, 2147483648
        %v1092 = vmul.f32 %v1091, 1.442695
        %v1093 = vpow.pop %v1092
        %v1094 = vadd.f32 %v1093, 1.0
        %v1095 = vrcp.pop %v1094
        %v1096 = vmul.f32 1.0, %v1095
        %v1097 = vxor.u32 %v1088, 2147483648
        %v1098 = vmul.f32 %v1097, 1.442695
        %v1099 = vpow.pop %v1098
        %v1100 = vadd.f32 %v1099, 1.0
        %v1101 = vrcp.pop %v1100
        %v1102 = vmul.f32 1.0, %v1101
        %v1103 = vtanh.pop %v1089
        %v1104 = vxor.u32 %v1090, 2147483648
        %v1105 = vmul.f32 %v1104, 1.442695
        %v1106 = vpow.pop %v1105
        %v1107 = vadd.f32 %v1106, 1.0
        %v1108 = vrcp.pop %v1107
        %v1109 = vmul.f32 1.0, %v1108
        %v1110 = vmul.f32 %v1102, %v807
        %v1111 = vmul.f32 %v1096, %v1103
        %v1112 = vadd.f32 %v1110, %v1111
        %v1113 = vtanh.pop %v1112
        %v1114 = vmul.f32 %v1109, %v1113
        %v1115 = vpack.c.bf16 %v1114, %v1114
        %1116 = vst [vmem:[#allocation3] sm:$0xf] %v1115
        %v1117 = vld [vmem:[#allocation2 + $0x20] sm:$0xff]
        %v1118 = vld [vmem:[#allocation2 + $0x28] sm:$0xff]
        %v1119 = vld [vmem:[#allocation2 + $0x30] sm:$0xff]
        %v1120 = vld [vmem:[#allocation2 + $0x38] sm:$0xff]
        %v1121 = vld [vmem:[#allocation9] sm:$0xff]
        %v1122 = vld [vmem:[#allocation9 + $0x8] sm:$0xff]
        %v1123 = vld [vmem:[#allocation9 + $0x10] sm:$0xff]
        %v1124 = vld [vmem:[#allocation9 + $0x18] sm:$0xff]
        %v1125 = vld [vmem:[#allocation9 + $0x20] sm:$0xff]
        %v1126 = vld [vmem:[#allocation9 + $0x28] sm:$0xff]
        %v1127 = vld [vmem:[#allocation9 + $0x30] sm:$0xff]
        %v1128 = vld [vmem:[#allocation9 + $0x38] sm:$0xff]
        %v1129 = vld [vmem:[#allocation9 + $0x40] sm:$0xff]
        %v1130 = vld [vmem:[#allocation9 + $0x48] sm:$0xff]
        %v1131 = vld [vmem:[#allocation9 + $0x50] sm:$0xff]
        %v1132 = vld [vmem:[#allocation9 + $0x58] sm:$0xff]
        %v1133 = vld [vmem:[#allocation9 + $0x60] sm:$0xff]
        %v1134 = vld [vmem:[#allocation9 + $0x68] sm:$0xff]
        %v1135 = vld [vmem:[#allocation9 + $0x70] sm:$0xff]
        %v1136 = vld [vmem:[#allocation9 + $0x78] sm:$0xff]
        %v1137 = vld [vmem:[#allocation9 + $0x80] sm:$0xff]
        %v1138 = vld [vmem:[#allocation9 + $0x88] sm:$0xff]
        %v1139 = vld [vmem:[#allocation9 + $0x90] sm:$0xff]
        %v1140 = vld [vmem:[#allocation9 + $0x98] sm:$0xff]
        %v1141 = vld [vmem:[#allocation9 + $0xa0] sm:$0xff]
        %v1142 = vld [vmem:[#allocation9 + $0xa8] sm:$0xff]
        %v1143 = vld [vmem:[#allocation9 + $0xb0] sm:$0xff]
        %v1144 = vld [vmem:[#allocation9 + $0xb8] sm:$0xff]
        %v1145 = vld [vmem:[#allocation9 + $0xc0] sm:$0xff]
        %v1146 = vld [vmem:[#allocation9 + $0xc8] sm:$0xff]
        %v1147 = vld [vmem:[#allocation9 + $0xd0] sm:$0xff]
        %v1148 = vld [vmem:[#allocation9 + $0xd8] sm:$0xff]
        %v1149 = vld [vmem:[#allocation9 + $0xe0] sm:$0xff]
        %v1150 = vld [vmem:[#allocation9 + $0xe8] sm:$0xff]
        %v1151 = vld [vmem:[#allocation9 + $0xf0] sm:$0xff]
        %v1152 = vld [vmem:[#allocation9 + $0xf8] sm:$0xff]
        %v1185 = vunpack.c.l.b16 %v1121
        %v1186 = vunpack.c.h.b16 %v1121
        %v1187 = vunpack.c.l.b16 %v1122
        %v1188 = vunpack.c.h.b16 %v1122
        %v1189 = vunpack.c.l.b16 %v1123
        %v1190 = vunpack.c.h.b16 %v1123
        %v1191 = vunpack.c.l.b16 %v1124
        %v1192 = vunpack.c.h.b16 %v1124
        %v1193 = vunpack.c.l.b16 %v1125
        %v1194 = vunpack.c.h.b16 %v1125
        %v1195 = vunpack.c.l.b16 %v1126
        %v1196 = vunpack.c.h.b16 %v1126
        %v1197 = vunpack.c.l.b16 %v1127
        %v1198 = vunpack.c.h.b16 %v1127
        %v1199 = vunpack.c.l.b16 %v1128
        %v1200 = vunpack.c.h.b16 %v1128
        %v1201 = vunpack.c.l.b16 %v1129
        %v1202 = vunpack.c.h.b16 %v1129
        %v1203 = vunpack.c.l.b16 %v1130
        %v1204 = vunpack.c.h.b16 %v1130
        %v1205 = vunpack.c.l.b16 %v1131
        %v1206 = vunpack.c.h.b16 %v1131
        %v1207 = vunpack.c.l.b16 %v1132
        %v1208 = vunpack.c.h.b16 %v1132
        %v1209 = vunpack.c.l.b16 %v1133
        %v1210 = vunpack.c.h.b16 %v1133
        %v1211 = vunpack.c.l.b16 %v1134
        %v1212 = vunpack.c.h.b16 %v1134
        %v1213 = vunpack.c.l.b16 %v1135
        %v1214 = vunpack.c.h.b16 %v1135
        %v1215 = vunpack.c.l.b16 %v1136
        %v1216 = vunpack.c.h.b16 %v1136
        %v1217 = vunpack.c.l.b16 %v1137
        %v1218 = vunpack.c.h.b16 %v1137
        %v1219 = vunpack.c.l.b16 %v1138
        %v1220 = vunpack.c.h.b16 %v1138
        %v1221 = vunpack.c.l.b16 %v1139
        %v1222 = vunpack.c.h.b16 %v1139
        %v1223 = vunpack.c.l.b16 %v1140
        %v1224 = vunpack.c.h.b16 %v1140
        %v1225 = vunpack.c.l.b16 %v1141
        %v1226 = vunpack.c.h.b16 %v1141
        %v1227 = vunpack.c.l.b16 %v1142
        %v1228 = vunpack.c.h.b16 %v1142
        %v1229 = vunpack.c.l.b16 %v1143
        %v1230 = vunpack.c.h.b16 %v1143
        %v1231 = vunpack.c.l.b16 %v1144
        %v1232 = vunpack.c.h.b16 %v1144
        %v1233 = vunpack.c.l.b16 %v1145
        %v1234 = vunpack.c.h.b16 %v1145
        %v1235 = vunpack.c.l.b16 %v1146
        %v1236 = vunpack.c.h.b16 %v1146
        %v1237 = vunpack.c.l.b16 %v1147
        %v1238 = vunpack.c.h.b16 %v1147
        %v1239 = vunpack.c.l.b16 %v1148
        %v1240 = vunpack.c.h.b16 %v1148
        %v1241 = vunpack.c.l.b16 %v1149
        %v1242 = vunpack.c.h.b16 %v1149
        %v1243 = vunpack.c.l.b16 %v1150
        %v1244 = vunpack.c.h.b16 %v1150
        %v1245 = vunpack.c.l.b16 %v1151
        %v1246 = vunpack.c.h.b16 %v1151
        %v1247 = vunpack.c.l.b16 %v1152
        %v1248 = vunpack.c.h.b16 %v1152
        %v1249 = vpack.c.b16 %v1189, %v1185
        %v1250 = vpack.c.b16 %v1190, %v1186
        %v1251 = vpack.c.b16 %v1191, %v1187
        %v1252 = vpack.c.b16 %v1192, %v1188
        %v1253 = vpack.c.b16 %v1197, %v1193
        %v1254 = vpack.c.b16 %v1198, %v1194
        %v1255 = vpack.c.b16 %v1199, %v1195
        %v1256 = vpack.c.b16 %v1200, %v1196
        %v1257 = vpack.c.b16 %v1205, %v1201
        %v1258 = vpack.c.b16 %v1206, %v1202
        %v1259 = vpack.c.b16 %v1207, %v1203
        %v1260 = vpack.c.b16 %v1208, %v1204
        %v1261 = vpack.c.b16 %v1213, %v1209
        %v1262 = vpack.c.b16 %v1214, %v1210
        %v1263 = vpack.c.b16 %v1215, %v1211
        %v1264 = vpack.c.b16 %v1216, %v1212
        %v1265 = vpack.c.b16 %v1221, %v1217
        %v1266 = vpack.c.b16 %v1222, %v1218
        %v1267 = vpack.c.b16 %v1223, %v1219
        %v1268 = vpack.c.b16 %v1224, %v1220
        %v1269 = vpack.c.b16 %v1229, %v1225
        %v1270 = vpack.c.b16 %v1230, %v1226
        %v1271 = vpack.c.b16 %v1231, %v1227
        %v1272 = vpack.c.b16 %v1232, %v1228
        %v1273 = vpack.c.b16 %v1237, %v1233
        %v1274 = vpack.c.b16 %v1238, %v1234
        %v1275 = vpack.c.b16 %v1239, %v1235
        %v1276 = vpack.c.b16 %v1240, %v1236
        %v1277 = vpack.c.b16 %v1245, %v1241
        %v1278 = vpack.c.b16 %v1246, %v1242
        %v1279 = vpack.c.b16 %v1247, %v1243
        %v1280 = vpack.c.b16 %v1248, %v1244
        %1313 = vmatprep.subr.bf16.mxu0 %v1278
        %1314 = vmatpush1.bf16.msra.mxu0 %v1277
        %1315 = vmatprep.subr.bf16.mxu0 %v1274
        %1316 = vmatpush1.bf16.msra.mxu0 %v1273
        %1317 = vmatprep.subr.bf16.mxu0 %v1270
        %1318 = vmatpush1.bf16.msra.mxu0 %v1269
        %1319 = vmatprep.subr.bf16.mxu0 %v1266
        %1320 = vmatpush1.bf16.msra.mxu0 %v1265
        %1321 = vmatprep.subr.bf16.mxu0 %v1262
        %1322 = vmatpush1.bf16.msra.mxu0 %v1261
        %1323 = vmatprep.subr.bf16.mxu0 %v1258
        %1324 = vmatpush1.bf16.msra.mxu0 %v1257
        %1325 = vmatprep.subr.bf16.mxu0 %v1254
        %1326 = vmatpush1.bf16.msra.mxu0 %v1253
        %1327 = vmatprep.subr.bf16.mxu0 %v1250
        %1328 = vmatpush1.bf16.msra.mxu0 %v1249
        %1329 = vmatprep.subr.bf16.mxu0 0
        %1330 = vmatpush2.bf16.msra.mxu0 0
        %1331 = vmatprep.subr.bf16.mxu0 0
        %1332 = vmatpush2.bf16.msra.mxu0 0
        %1333 = vmatprep.subr.bf16.mxu0 0
        %1334 = vmatpush2.bf16.msra.mxu0 0
        %1335 = vmatprep.subr.bf16.mxu0 0
        %1336 = vmatpush2.bf16.msra.mxu0 0
        %1337 = vmatprep.subr.bf16.mxu0 0
        %1338 = vmatpush2.bf16.msra.mxu0 0
        %1339 = vmatprep.subr.bf16.mxu0 0
        %1340 = vmatpush2.bf16.msra.mxu0 0
        %1341 = vmatprep.subr.bf16.mxu0 0
        %1342 = vmatpush2.bf16.msra.mxu0 0
        %1343 = vmatprep.subr.bf16.mxu0 0
        %1344 = vmatpush2.bf16.msra.mxu0 0
        %1345 = vmatprep.mubr.bf16.mxu0 0
        %1346 = vmatmul.mubr.bf16.gmra.mxu0 %v1115
        %v1347 = vpop.f32.mrf.mxu0
        %v1348 = vadd.f32 0.0, %v1347
        %v1349 = vpop.f32.mrf.mxu0
        %v1350 = vadd.f32 0.0, %v1349
        %v1351 = vpop.f32.mrf.mxu0
        %v1352 = vpop.f32.mrf.mxu0
        %1353 = vdwg.mxu0
        %1354 = vmatprep.subr.bf16.mxu0 %v1280
        %1355 = vmatpush1.bf16.msra.mxu0 %v1279
        %1356 = vmatprep.subr.bf16.mxu0 %v1276
        %1357 = vmatpush1.bf16.msra.mxu0 %v1275
        %1358 = vmatprep.subr.bf16.mxu0 %v1272
        %1359 = vmatpush1.bf16.msra.mxu0 %v1271
        %1360 = vmatprep.subr.bf16.mxu0 %v1268
        %1361 = vmatpush1.bf16.msra.mxu0 %v1267
        %1362 = vmatprep.subr.bf16.mxu0 %v1264
        %1363 = vmatpush1.bf16.msra.mxu0 %v1263
        %1364 = vmatprep.subr.bf16.mxu0 %v1260
        %1365 = vmatpush1.bf16.msra.mxu0 %v1259
        %1366 = vmatprep.subr.bf16.mxu0 %v1256
        %1367 = vmatpush1.bf16.msra.mxu0 %v1255
        %1368 = vmatprep.subr.bf16.mxu0 %v1252
        %1369 = vmatpush1.bf16.msra.mxu0 %v1251
        %1370 = vmatprep.subr.bf16.mxu0 0
        %1371 = vmatpush2.bf16.msra.mxu0 0
        %1372 = vmatprep.subr.bf16.mxu0 0
        %1373 = vmatpush2.bf16.msra.mxu0 0
        %1374 = vmatprep.subr.bf16.mxu0 0
        %1375 = vmatpush2.bf16.msra.mxu0 0
        %1376 = vmatprep.subr.bf16.mxu0 0
        %1377 = vmatpush2.bf16.msra.mxu0 0
        %1378 = vmatprep.subr.bf16.mxu0 0
        %1379 = vmatpush2.bf16.msra.mxu0 0
        %1380 = vmatprep.subr.bf16.mxu0 0
        %1381 = vmatpush2.bf16.msra.mxu0 0
        %1382 = vmatprep.subr.bf16.mxu0 0
        %1383 = vmatpush2.bf16.msra.mxu0 0
        %1384 = vmatprep.subr.bf16.mxu0 0
        %1385 = vmatpush2.bf16.msra.mxu0 0
        %1386 = vmatprep.mubr.bf16.mxu0 0
        %1387 = vmatmul.mubr.bf16.gmra.mxu0 %v1115
        %v1388 = vpop.f32.mrf.mxu0
        %v1389 = vadd.f32 0.0, %v1388
        %v1390 = vpop.f32.mrf.mxu0
        %v1391 = vadd.f32 0.0, %v1390
        %v1392 = vpop.f32.mrf.mxu0
        %v1393 = vpop.f32.mrf.mxu0
        %1394 = vdwg.mxu0
        %v1395 = vadd.f32 %v1117, %v1348
        %v1396 = vadd.f32 %v1118, %v1350
        %v1397 = vadd.f32 %v1119, %v1389
        %v1398 = vadd.f32 %v1120, %v1391
        %v1399 = vxor.u32 %v1395, 2147483648
        %v1400 = vmul.f32 %v1399, 1.442695
        %v1401 = vpow.pop %v1400
        %v1402 = vadd.f32 %v1401, 1.0
        %v1403 = vrcp.pop %v1402
        %v1404 = vmul.f32 1.0, %v1403
        %v1405 = vxor.u32 %v1396, 2147483648
        %v1406 = vmul.f32 %v1405, 1.442695
        %v1407 = vpow.pop %v1406
        %v1408 = vadd.f32 %v1407, 1.0
        %v1409 = vrcp.pop %v1408
        %v1410 = vmul.f32 1.0, %v1409
        %v1411 = vtanh.pop %v1397
        %v1412 = vxor.u32 %v1398, 2147483648
        %v1413 = vmul.f32 %v1412, 1.442695
        %v1414 = vpow.pop %v1413
        %v1415 = vadd.f32 %v1414, 1.0
        %v1416 = vrcp.pop %v1415
        %v1417 = vmul.f32 1.0, %v1416
        %v1418 = vmul.f32 %v1410, %v1112
        %v1419 = vmul.f32 %v1404, %v1411
        %v1420 = vadd.f32 %v1418, %v1419
        %v1421 = vtanh.pop %v1420
        %v1422 = vmul.f32 %v1417, %v1421
        %v1423 = vpack.c.bf16 %v1422, %v1422
        %1424 = vst [vmem:[#allocation3 + $0x4] sm:$0xf] %v1423
        %v1425 = vld [vmem:[#allocation2 + $0x40] sm:$0xff]
        %v1426 = vld [vmem:[#allocation2 + $0x48] sm:$0xff]
        %v1427 = vld [vmem:[#allocation2 + $0x50] sm:$0xff]
        %v1428 = vld [vmem:[#allocation2 + $0x58] sm:$0xff]
        %v1429 = vld [vmem:[#allocation9] sm:$0xff]
        %v1430 = vld [vmem:[#allocation9 + $0x8] sm:$0xff]
        %v1431 = vld [vmem:[#allocation9 + $0x10] sm:$0xff]
        %v1432 = vld [vmem:[#allocation9 + $0x18] sm:$0xff]
        %v1433 = vld [vmem:[#allocation9 + $0x20] sm:$0xff]
        %v1434 = vld [vmem:[#allocation9 + $0x28] sm:$0xff]
        %v1435 = vld [vmem:[#allocation9 + $0x30] sm:$0xff]
        %v1436 = vld [vmem:[#allocation9 + $0x38] sm:$0xff]
        %v1437 = vld [vmem:[#allocation9 + $0x40] sm:$0xff]
        %v1438 = vld [vmem:[#allocation9 + $0x48] sm:$0xff]
        %v1439 = vld [vmem:[#allocation9 + $0x50] sm:$0xff]
        %v1440 = vld [vmem:[#allocation9 + $0x58] sm:$0xff]
        %v1441 = vld [vmem:[#allocation9 + $0x60] sm:$0xff]
        %v1442 = vld [vmem:[#allocation9 + $0x68] sm:$0xff]
        %v1443 = vld [vmem:[#allocation9 + $0x70] sm:$0xff]
        %v1444 = vld [vmem:[#allocation9 + $0x78] sm:$0xff]
        %v1445 = vld [vmem:[#allocation9 + $0x80] sm:$0xff]
        %v1446 = vld [vmem:[#allocation9 + $0x88] sm:$0xff]
        %v1447 = vld [vmem:[#allocation9 + $0x90] sm:$0xff]
        %v1448 = vld [vmem:[#allocation9 + $0x98] sm:$0xff]
        %v1449 = vld [vmem:[#allocation9 + $0xa0] sm:$0xff]
        %v1450 = vld [vmem:[#allocation9 + $0xa8] sm:$0xff]
        %v1451 = vld [vmem:[#allocation9 + $0xb0] sm:$0xff]
        %v1452 = vld [vmem:[#allocation9 + $0xb8] sm:$0xff]
        %v1453 = vld [vmem:[#allocation9 + $0xc0] sm:$0xff]
        %v1454 = vld [vmem:[#allocation9 + $0xc8] sm:$0xff]
        %v1455 = vld [vmem:[#allocation9 + $0xd0] sm:$0xff]
        %v1456 = vld [vmem:[#allocation9 + $0xd8] sm:$0xff]
        %v1457 = vld [vmem:[#allocation9 + $0xe0] sm:$0xff]
        %v1458 = vld [vmem:[#allocation9 + $0xe8] sm:$0xff]
        %v1459 = vld [vmem:[#allocation9 + $0xf0] sm:$0xff]
        %v1460 = vld [vmem:[#allocation9 + $0xf8] sm:$0xff]
        %v1493 = vunpack.c.l.b16 %v1429
        %v1494 = vunpack.c.h.b16 %v1429
        %v1495 = vunpack.c.l.b16 %v1430
        %v1496 = vunpack.c.h.b16 %v1430
        %v1497 = vunpack.c.l.b16 %v1431
        %v1498 = vunpack.c.h.b16 %v1431
        %v1499 = vunpack.c.l.b16 %v1432
        %v1500 = vunpack.c.h.b16 %v1432
        %v1501 = vunpack.c.l.b16 %v1433
        %v1502 = vunpack.c.h.b16 %v1433
        %v1503 = vunpack.c.l.b16 %v1434
        %v1504 = vunpack.c.h.b16 %v1434
        %v1505 = vunpack.c.l.b16 %v1435
        %v1506 = vunpack.c.h.b16 %v1435
        %v1507 = vunpack.c.l.b16 %v1436
        %v1508 = vunpack.c.h.b16 %v1436
        %v1509 = vunpack.c.l.b16 %v1437
        %v1510 = vunpack.c.h.b16 %v1437
        %v1511 = vunpack.c.l.b16 %v1438
        %v1512 = vunpack.c.h.b16 %v1438
        %v1513 = vunpack.c.l.b16 %v1439
        %v1514 = vunpack.c.h.b16 %v1439
        %v1515 = vunpack.c.l.b16 %v1440
        %v1516 = vunpack.c.h.b16 %v1440
        %v1517 = vunpack.c.l.b16 %v1441
        %v1518 = vunpack.c.h.b16 %v1441
        %v1519 = vunpack.c.l.b16 %v1442
        %v1520 = vunpack.c.h.b16 %v1442
        %v1521 = vunpack.c.l.b16 %v1443
        %v1522 = vunpack.c.h.b16 %v1443
        %v1523 = vunpack.c.l.b16 %v1444
        %v1524 = vunpack.c.h.b16 %v1444
        %v1525 = vunpack.c.l.b16 %v1445
        %v1526 = vunpack.c.h.b16 %v1445
        %v1527 = vunpack.c.l.b16 %v1446
        %v1528 = vunpack.c.h.b16 %v1446
        %v1529 = vunpack.c.l.b16 %v1447
        %v1530 = vunpack.c.h.b16 %v1447
        %v1531 = vunpack.c.l.b16 %v1448
        %v1532 = vunpack.c.h.b16 %v1448
        %v1533 = vunpack.c.l.b16 %v1449
        %v1534 = vunpack.c.h.b16 %v1449
        %v1535 = vunpack.c.l.b16 %v1450
        %v1536 = vunpack.c.h.b16 %v1450
        %v1537 = vunpack.c.l.b16 %v1451
        %v1538 = vunpack.c.h.b16 %v1451
        %v1539 = vunpack.c.l.b16 %v1452
        %v1540 = vunpack.c.h.b16 %v1452
        %v1541 = vunpack.c.l.b16 %v1453
        %v1542 = vunpack.c.h.b16 %v1453
        %v1543 = vunpack.c.l.b16 %v1454
        %v1544 = vunpack.c.h.b16 %v1454
        %v1545 = vunpack.c.l.b16 %v1455
        %v1546 = vunpack.c.h.b16 %v1455
        %v1547 = vunpack.c.l.b16 %v1456
        %v1548 = vunpack.c.h.b16 %v1456
        %v1549 = vunpack.c.l.b16 %v1457
        %v1550 = vunpack.c.h.b16 %v1457
        %v1551 = vunpack.c.l.b16 %v1458
        %v1552 = vunpack.c.h.b16 %v1458
        %v1553 = vunpack.c.l.b16 %v1459
        %v1554 = vunpack.c.h.b16 %v1459
        %v1555 = vunpack.c.l.b16 %v1460
        %v1556 = vunpack.c.h.b16 %v1460
        %v1557 = vpack.c.b16 %v1497, %v1493
        %v1558 = vpack.c.b16 %v1498, %v1494
        %v1559 = vpack.c.b16 %v1499, %v1495
        %v1560 = vpack.c.b16 %v1500, %v1496
        %v1561 = vpack.c.b16 %v1505, %v1501
        %v1562 = vpack.c.b16 %v1506, %v1502
        %v1563 = vpack.c.b16 %v1507, %v1503
        %v1564 = vpack.c.b16 %v1508, %v1504
        %v1565 = vpack.c.b16 %v1513, %v1509
        %v1566 = vpack.c.b16 %v1514, %v1510
        %v1567 = vpack.c.b16 %v1515, %v1511
        %v1568 = vpack.c.b16 %v1516, %v1512
        %v1569 = vpack.c.b16 %v1521, %v1517
        %v1570 = vpack.c.b16 %v1522, %v1518
        %v1571 = vpack.c.b16 %v1523, %v1519
        %v1572 = vpack.c.b16 %v1524, %v1520
        %v1573 = vpack.c.b16 %v1529, %v1525
        %v1574 = vpack.c.b16 %v1530, %v1526
        %v1575 = vpack.c.b16 %v1531, %v1527
        %v1576 = vpack.c.b16 %v1532, %v1528
        %v1577 = vpack.c.b16 %v1537, %v1533
        %v1578 = vpack.c.b16 %v1538, %v1534
        %v1579 = vpack.c.b16 %v1539, %v1535
        %v1580 = vpack.c.b16 %v1540, %v1536
        %v1581 = vpack.c.b16 %v1545, %v1541
        %v1582 = vpack.c.b16 %v1546, %v1542
        %v1583 = vpack.c.b16 %v1547, %v1543
        %v1584 = vpack.c.b16 %v1548, %v1544
        %v1585 = vpack.c.b16 %v1553, %v1549
        %v1586 = vpack.c.b16 %v1554, %v1550
        %v1587 = vpack.c.b16 %v1555, %v1551
        %v1588 = vpack.c.b16 %v1556, %v1552
        %1621 = vmatprep.subr.bf16.mxu0 %v1586
        %1622 = vmatpush1.bf16.msra.mxu0 %v1585
        %1623 = vmatprep.subr.bf16.mxu0 %v1582
        %1624 = vmatpush1.bf16.msra.mxu0 %v1581
        %1625 = vmatprep.subr.bf16.mxu0 %v1578
        %1626 = vmatpush1.bf16.msra.mxu0 %v1577
        %1627 = vmatprep.subr.bf16.mxu0 %v1574
        %1628 = vmatpush1.bf16.msra.mxu0 %v1573
        %1629 = vmatprep.subr.bf16.mxu0 %v1570
        %1630 = vmatpush1.bf16.msra.mxu0 %v1569
        %1631 = vmatprep.subr.bf16.mxu0 %v1566
        %1632 = vmatpush1.bf16.msra.mxu0 %v1565
        %1633 = vmatprep.subr.bf16.mxu0 %v1562
        %1634 = vmatpush1.bf16.msra.mxu0 %v1561
        %1635 = vmatprep.subr.bf16.mxu0 %v1558
        %1636 = vmatpush1.bf16.msra.mxu0 %v1557
        %1637 = vmatprep.subr.bf16.mxu0 0
        %1638 = vmatpush2.bf16.msra.mxu0 0
        %1639 = vmatprep.subr.bf16.mxu0 0
        %1640 = vmatpush2.bf16.msra.mxu0 0
        %1641 = vmatprep.subr.bf16.mxu0 0
        %1642 = vmatpush2.bf16.msra.mxu0 0
        %1643 = vmatprep.subr.bf16.mxu0 0
        %1644 = vmatpush2.bf16.msra.mxu0 0
        %1645 = vmatprep.subr.bf16.mxu0 0
        %1646 = vmatpush2.bf16.msra.mxu0 0
        %1647 = vmatprep.subr.bf16.mxu0 0
        %1648 = vmatpush2.bf16.msra.mxu0 0
        %1649 = vmatprep.subr.bf16.mxu0 0
        %1650 = vmatpush2.bf16.msra.mxu0 0
        %1651 = vmatprep.subr.bf16.mxu0 0
        %1652 = vmatpush2.bf16.msra.mxu0 0
        %1653 = vmatprep.mubr.bf16.mxu0 0
        %1654 = vmatmul.mubr.bf16.gmra.mxu0 %v1423
        %v1655 = vpop.f32.mrf.mxu0
        %v1656 = vadd.f32 0.0, %v1655
        %v1657 = vpop.f32.mrf.mxu0
        %v1658 = vadd.f32 0.0, %v1657
        %v1659 = vpop.f32.mrf.mxu0
        %v1660 = vpop.f32.mrf.mxu0
        %1661 = vdwg.mxu0
        %1662 = vmatprep.subr.bf16.mxu0 %v1588
        %1663 = vmatpush1.bf16.msra.mxu0 %v1587
        %1664 = vmatprep.subr.bf16.mxu0 %v1584
        %1665 = vmatpush1.bf16.msra.mxu0 %v1583
        %1666 = vmatprep.subr.bf16.mxu0 %v1580
        %1667 = vmatpush1.bf16.msra.mxu0 %v1579
        %1668 = vmatprep.subr.bf16.mxu0 %v1576
        %1669 = vmatpush1.bf16.msra.mxu0 %v1575
        %1670 = vmatprep.subr.bf16.mxu0 %v1572
        %1671 = vmatpush1.bf16.msra.mxu0 %v1571
        %1672 = vmatprep.subr.bf16.mxu0 %v1568
        %1673 = vmatpush1.bf16.msra.mxu0 %v1567
        %1674 = vmatprep.subr.bf16.mxu0 %v1564
        %1675 = vmatpush1.bf16.msra.mxu0 %v1563
        %1676 = vmatprep.subr.bf16.mxu0 %v1560
        %1677 = vmatpush1.bf16.msra.mxu0 %v1559
        %1678 = vmatprep.subr.bf16.mxu0 0
        %1679 = vmatpush2.bf16.msra.mxu0 0
        %1680 = vmatprep.subr.bf16.mxu0 0
        %1681 = vmatpush2.bf16.msra.mxu0 0
        %1682 = vmatprep.subr.bf16.mxu0 0
        %1683 = vmatpush2.bf16.msra.mxu0 0
        %1684 = vmatprep.subr.bf16.mxu0 0
        %1685 = vmatpush2.bf16.msra.mxu0 0
        %1686 = vmatprep.subr.bf16.mxu0 0
        %1687 = vmatpush2.bf16.msra.mxu0 0
        %1688 = vmatprep.subr.bf16.mxu0 0
        %1689 = vmatpush2.bf16.msra.mxu0 0
        %1690 = vmatprep.subr.bf16.mxu0 0
        %1691 = vmatpush2.bf16.msra.mxu0 0
        %1692 = vmatprep.subr.bf16.mxu0 0
        %1693 = vmatpush2.bf16.msra.mxu0 0
        %1694 = vmatprep.mubr.bf16.mxu0 0
        %1695 = vmatmul.mubr.bf16.gmra.mxu0 %v1423
        %v1696 = vpop.f32.mrf.mxu0
        %v1697 = vadd.f32 0.0, %v1696
        %v1698 = vpop.f32.mrf.mxu0
        %v1699 = vadd.f32 0.0, %v1698
        %v1700 = vpop.f32.mrf.mxu0
        %v1701 = vpop.f32.mrf.mxu0
        %1702 = vdwg.mxu0
        %v1703 = vadd.f32 %v1425, %v1656
        %v1704 = vadd.f32 %v1426, %v1658
        %v1705 = vadd.f32 %v1427, %v1697
        %v1706 = vadd.f32 %v1428, %v1699
        %v1707 = vxor.u32 %v1703, 2147483648
        %v1708 = vmul.f32 %v1707, 1.442695
        %v1709 = vpow.pop %v1708
        %v1710 = vadd.f32 %v1709, 1.0
        %v1711 = vrcp.pop %v1710
        %v1712 = vmul.f32 1.0, %v1711
        %v1713 = vxor.u32 %v1704, 2147483648
        %v1714 = vmul.f32 %v1713, 1.442695
        %v1715 = vpow.pop %v1714
        %v1716 = vadd.f32 %v1715, 1.0
        %v1717 = vrcp.pop %v1716
        %v1718 = vmul.f32 1.0, %v1717
        %v1719 = vtanh.pop %v1705
        %v1720 = vxor.u32 %v1706, 2147483648
        %v1721 = vmul.f32 %v1720, 1.442695
        %v1722 = vpow.pop %v1721
        %v1723 = vadd.f32 %v1722, 1.0
        %v1724 = vrcp.pop %v1723
        %v1725 = vmul.f32 1.0, %v1724
        %v1726 = vmul.f32 %v1718, %v1420
        %v1727 = vmul.f32 %v1712, %v1719
        %v1728 = vadd.f32 %v1726, %v1727
        %v1729 = vtanh.pop %v1728
        %v1730 = vmul.f32 %v1725, %v1729
        %v1731 = vpack.c.bf16 %v1730, %v1730
        %1732 = vst [vmem:[#allocation3 + $0x8] sm:$0xf] %v1731
        %v1733 = vld [vmem:[#allocation2 + $0x60] sm:$0xff]
        %v1734 = vld [vmem:[#allocation2 + $0x68] sm:$0xff]
        %v1735 = vld [vmem:[#allocation2 + $0x70] sm:$0xff]
        %v1736 = vld [vmem:[#allocation2 + $0x78] sm:$0xff]
        %v1737 = vld [vmem:[#allocation9] sm:$0xff]
        %v1738 = vld [vmem:[#allocation9 + $0x8] sm:$0xff]
        %v1739 = vld [vmem:[#allocation9 + $0x10] sm:$0xff]
        %v1740 = vld [vmem:[#allocation9 + $0x18] sm:$0xff]
        %v1741 = vld [vmem:[#allocation9 + $0x20] sm:$0xff]
        %v1742 = vld [vmem:[#allocation9 + $0x28] sm:$0xff]
        %v1743 = vld [vmem:[#allocation9 + $0x30] sm:$0xff]
        %v1744 = vld [vmem:[#allocation9 + $0x38] sm:$0xff]
        %v1745 = vld [vmem:[#allocation9 + $0x40] sm:$0xff]
        %v1746 = vld [vmem:[#allocation9 + $0x48] sm:$0xff]
        %v1747 = vld [vmem:[#allocation9 + $0x50] sm:$0xff]
        %v1748 = vld [vmem:[#allocation9 + $0x58] sm:$0xff]
        %v1749 = vld [vmem:[#allocation9 + $0x60] sm:$0xff]
        %v1750 = vld [vmem:[#allocation9 + $0x68] sm:$0xff]
        %v1751 = vld [vmem:[#allocation9 + $0x70] sm:$0xff]
        %v1752 = vld [vmem:[#allocation9 + $0x78] sm:$0xff]
        %v1753 = vld [vmem:[#allocation9 + $0x80] sm:$0xff]
        %v1754 = vld [vmem:[#allocation9 + $0x88] sm:$0xff]
        %v1755 = vld [vmem:[#allocation9 + $0x90] sm:$0xff]
        %v1756 = vld [vmem:[#allocation9 + $0x98] sm:$0xff]
        %v1757 = vld [vmem:[#allocation9 + $0xa0] sm:$0xff]
        %v1758 = vld [vmem:[#allocation9 + $0xa8] sm:$0xff]
        %v1759 = vld [vmem:[#allocation9 + $0xb0] sm:$0xff]
        %v1760 = vld [vmem:[#allocation9 + $0xb8] sm:$0xff]
        %v1761 = vld [vmem:[#allocation9 + $0xc0] sm:$0xff]
        %v1762 = vld [vmem:[#allocation9 + $0xc8] sm:$0xff]
        %v1763 = vld [vmem:[#allocation9 + $0xd0] sm:$0xff]
        %v1764 = vld [vmem:[#allocation9 + $0xd8] sm:$0xff]
        %v1765 = vld [vmem:[#allocation9 + $0xe0] sm:$0xff]
        %v1766 = vld [vmem:[#allocation9 + $0xe8] sm:$0xff]
        %v1767 = vld [vmem:[#allocation9 + $0xf0] sm:$0xff]
        %v1768 = vld [vmem:[#allocation9 + $0xf8] sm:$0xff]
        %v1801 = vunpack.c.l.b16 %v1737
        %v1802 = vunpack.c.h.b16 %v1737
        %v1803 = vunpack.c.l.b16 %v1738
        %v1804 = vunpack.c.h.b16 %v1738
        %v1805 = vunpack.c.l.b16 %v1739
        %v1806 = vunpack.c.h.b16 %v1739
        %v1807 = vunpack.c.l.b16 %v1740
        %v1808 = vunpack.c.h.b16 %v1740
        %v1809 = vunpack.c.l.b16 %v1741
        %v1810 = vunpack.c.h.b16 %v1741
        %v1811 = vunpack.c.l.b16 %v1742
        %v1812 = vunpack.c.h.b16 %v1742
        %v1813 = vunpack.c.l.b16 %v1743
        %v1814 = vunpack.c.h.b16 %v1743
        %v1815 = vunpack.c.l.b16 %v1744
        %v1816 = vunpack.c.h.b16 %v1744
        %v1817 = vunpack.c.l.b16 %v1745
        %v1818 = vunpack.c.h.b16 %v1745
        %v1819 = vunpack.c.l.b16 %v1746
        %v1820 = vunpack.c.h.b16 %v1746
        %v1821 = vunpack.c.l.b16 %v1747
        %v1822 = vunpack.c.h.b16 %v1747
        %v1823 = vunpack.c.l.b16 %v1748
        %v1824 = vunpack.c.h.b16 %v1748
        %v1825 = vunpack.c.l.b16 %v1749
        %v1826 = vunpack.c.h.b16 %v1749
        %v1827 = vunpack.c.l.b16 %v1750
        %v1828 = vunpack.c.h.b16 %v1750
        %v1829 = vunpack.c.l.b16 %v1751
        %v1830 = vunpack.c.h.b16 %v1751
        %v1831 = vunpack.c.l.b16 %v1752
        %v1832 = vunpack.c.h.b16 %v1752
        %v1833 = vunpack.c.l.b16 %v1753
        %v1834 = vunpack.c.h.b16 %v1753
        %v1835 = vunpack.c.l.b16 %v1754
        %v1836 = vunpack.c.h.b16 %v1754
        %v1837 = vunpack.c.l.b16 %v1755
        %v1838 = vunpack.c.h.b16 %v1755
        %v1839 = vunpack.c.l.b16 %v1756
        %v1840 = vunpack.c.h.b16 %v1756
        %v1841 = vunpack.c.l.b16 %v1757
        %v1842 = vunpack.c.h.b16 %v1757
        %v1843 = vunpack.c.l.b16 %v1758
        %v1844 = vunpack.c.h.b16 %v1758
        %v1845 = vunpack.c.l.b16 %v1759
        %v1846 = vunpack.c.h.b16 %v1759
        %v1847 = vunpack.c.l.b16 %v1760
        %v1848 = vunpack.c.h.b16 %v1760
        %v1849 = vunpack.c.l.b16 %v1761
        %v1850 = vunpack.c.h.b16 %v1761
        %v1851 = vunpack.c.l.b16 %v1762
        %v1852 = vunpack.c.h.b16 %v1762
        %v1853 = vunpack.c.l.b16 %v1763
        %v1854 = vunpack.c.h.b16 %v1763
        %v1855 = vunpack.c.l.b16 %v1764
        %v1856 = vunpack.c.h.b16 %v1764
        %v1857 = vunpack.c.l.b16 %v1765
        %v1858 = vunpack.c.h.b16 %v1765
        %v1859 = vunpack.c.l.b16 %v1766
        %v1860 = vunpack.c.h.b16 %v1766
        %v1861 = vunpack.c.l.b16 %v1767
        %v1862 = vunpack.c.h.b16 %v1767
        %v1863 = vunpack.c.l.b16 %v1768
        %v1864 = vunpack.c.h.b16 %v1768
        %v1865 = vpack.c.b16 %v1805, %v1801
        %v1866 = vpack.c.b16 %v1806, %v1802
        %v1867 = vpack.c.b16 %v1807, %v1803
        %v1868 = vpack.c.b16 %v1808, %v1804
        %v1869 = vpack.c.b16 %v1813, %v1809
        %v1870 = vpack.c.b16 %v1814, %v1810
        %v1871 = vpack.c.b16 %v1815, %v1811
        %v1872 = vpack.c.b16 %v1816, %v1812
        %v1873 = vpack.c.b16 %v1821, %v1817
        %v1874 = vpack.c.b16 %v1822, %v1818
        %v1875 = vpack.c.b16 %v1823, %v1819
        %v1876 = vpack.c.b16 %v1824, %v1820
        %v1877 = vpack.c.b16 %v1829, %v1825
        %v1878 = vpack.c.b16 %v1830, %v1826
        %v1879 = vpack.c.b16 %v1831, %v1827
        %v1880 = vpack.c.b16 %v1832, %v1828
        %v1881 = vpack.c.b16 %v1837, %v1833
        %v1882 = vpack.c.b16 %v1838, %v1834
        %v1883 = vpack.c.b16 %v1839, %v1835
        %v1884 = vpack.c.b16 %v1840, %v1836
        %v1885 = vpack.c.b16 %v1845, %v1841
        %v1886 = vpack.c.b16 %v1846, %v1842
        %v1887 = vpack.c.b16 %v1847, %v1843
        %v1888 = vpack.c.b16 %v1848, %v1844
        %v1889 = vpack.c.b16 %v1853, %v1849
        %v1890 = vpack.c.b16 %v1854, %v1850
        %v1891 = vpack.c.b16 %v1855, %v1851
        %v1892 = vpack.c.b16 %v1856, %v1852
        %v1893 = vpack.c.b16 %v1861, %v1857
        %v1894 = vpack.c.b16 %v1862, %v1858
        %v1895 = vpack.c.b16 %v1863, %v1859
        %v1896 = vpack.c.b16 %v1864, %v1860
        %1929 = vmatprep.subr.bf16.mxu0 %v1894
        %1930 = vmatpush1.bf16.msra.mxu0 %v1893
        %1931 = vmatprep.subr.bf16.mxu0 %v1890
        %1932 = vmatpush1.bf16.msra.mxu0 %v1889
        %1933 = vmatprep.subr.bf16.mxu0 %v1886
        %1934 = vmatpush1.bf16.msra.mxu0 %v1885
        %1935 = vmatprep.subr.bf16.mxu0 %v1882
        %1936 = vmatpush1.bf16.msra.mxu0 %v1881
        %1937 = vmatprep.subr.bf16.mxu0 %v1878
        %1938 = vmatpush1.bf16.msra.mxu0 %v1877
        %1939 = vmatprep.subr.bf16.mxu0 %v1874
        %1940 = vmatpush1.bf16.msra.mxu0 %v1873
        %1941 = vmatprep.subr.bf16.mxu0 %v1870
        %1942 = vmatpush1.bf16.msra.mxu0 %v1869
        %1943 = vmatprep.subr.bf16.mxu0 %v1866
        %1944 = vmatpush1.bf16.msra.mxu0 %v1865
        %1945 = vmatprep.subr.bf16.mxu0 0
        %1946 = vmatpush2.bf16.msra.mxu0 0
        %1947 = vmatprep.subr.bf16.mxu0 0
        %1948 = vmatpush2.bf16.msra.mxu0 0
        %1949 = vmatprep.subr.bf16.mxu0 0
        %1950 = vmatpush2.bf16.msra.mxu0 0
        %1951 = vmatprep.subr.bf16.mxu0 0
        %1952 = vmatpush2.bf16.msra.mxu0 0
        %1953 = vmatprep.subr.bf16.mxu0 0
        %1954 = vmatpush2.bf16.msra.mxu0 0
        %1955 = vmatprep.subr.bf16.mxu0 0
        %1956 = vmatpush2.bf16.msra.mxu0 0
        %1957 = vmatprep.subr.bf16.mxu0 0
        %1958 = vmatpush2.bf16.msra.mxu0 0
        %1959 = vmatprep.subr.bf16.mxu0 0
        %1960 = vmatpush2.bf16.msra.mxu0 0
        %1961 = vmatprep.mubr.bf16.mxu0 0
        %1962 = vmatmul.mubr.bf16.gmra.mxu0 %v1731
        %v1963 = vpop.f32.mrf.mxu0
        %v1964 = vadd.f32 0.0, %v1963
        %v1965 = vpop.f32.mrf.mxu0
        %v1966 = vadd.f32 0.0, %v1965
        %v1967 = vpop.f32.mrf.mxu0
        %v1968 = vpop.f32.mrf.mxu0
        %1969 = vdwg.mxu0
        %1970 = vmatprep.subr.bf16.mxu0 %v1896
        %1971 = vmatpush1.bf16.msra.mxu0 %v1895
        %1972 = vmatprep.subr.bf16.mxu0 %v1892
        %1973 = vmatpush1.bf16.msra.mxu0 %v1891
        %1974 = vmatprep.subr.bf16.mxu0 %v1888
        %1975 = vmatpush1.bf16.msra.mxu0 %v1887
        %1976 = vmatprep.subr.bf16.mxu0 %v1884
        %1977 = vmatpush1.bf16.msra.mxu0 %v1883
        %1978 = vmatprep.subr.bf16.mxu0 %v1880
        %1979 = vmatpush1.bf16.msra.mxu0 %v1879
        %1980 = vmatprep.subr.bf16.mxu0 %v1876
        %1981 = vmatpush1.bf16.msra.mxu0 %v1875
        %1982 = vmatprep.subr.bf16.mxu0 %v1872
        %1983 = vmatpush1.bf16.msra.mxu0 %v1871
        %1984 = vmatprep.subr.bf16.mxu0 %v1868
        %1985 = vmatpush1.bf16.msra.mxu0 %v1867
        %1986 = vmatprep.subr.bf16.mxu0 0
        %1987 = vmatpush2.bf16.msra.mxu0 0
        %1988 = vmatprep.subr.bf16.mxu0 0
        %1989 = vmatpush2.bf16.msra.mxu0 0
        %1990 = vmatprep.subr.bf16.mxu0 0
        %1991 = vmatpush2.bf16.msra.mxu0 0
        %1992 = vmatprep.subr.bf16.mxu0 0
        %1993 = vmatpush2.bf16.msra.mxu0 0
        %1994 = vmatprep.subr.bf16.mxu0 0
        %1995 = vmatpush2.bf16.msra.mxu0 0
        %1996 = vmatprep.subr.bf16.mxu0 0
        %1997 = vmatpush2.bf16.msra.mxu0 0
        %1998 = vmatprep.subr.bf16.mxu0 0
        %1999 = vmatpush2.bf16.msra.mxu0 0
        %2000 = vmatprep.subr.bf16.mxu0 0
        %2001 = vmatpush2.bf16.msra.mxu0 0
        %2002 = vmatprep.mubr.bf16.mxu0 0
        %2003 = vmatmul.mubr.bf16.gmra.mxu0 %v1731
        %v2004 = vpop.f32.mrf.mxu0
        %v2005 = vadd.f32 0.0, %v2004
        %v2006 = vpop.f32.mrf.mxu0
        %v2007 = vadd.f32 0.0, %v2006
        %v2008 = vpop.f32.mrf.mxu0
        %v2009 = vpop.f32.mrf.mxu0
        %2010 = vdwg.mxu0
        %v2011 = vadd.f32 %v1733, %v1964
        %v2012 = vadd.f32 %v1734, %v1966
        %v2013 = vadd.f32 %v1735, %v2005
        %v2014 = vadd.f32 %v1736, %v2007
        %v2015 = vxor.u32 %v2011, 2147483648
        %v2016 = vmul.f32 %v2015, 1.442695
        %v2017 = vpow.pop %v2016
        %v2018 = vadd.f32 %v2017, 1.0
        %v2019 = vrcp.pop %v2018
        %v2020 = vmul.f32 1.0, %v2019
        %v2021 = vxor.u32 %v2012, 2147483648
        %v2022 = vmul.f32 %v2021, 1.442695
        %v2023 = vpow.pop %v2022
        %v2024 = vadd.f32 %v2023, 1.0
        %v2025 = vrcp.pop %v2024
        %v2026 = vmul.f32 1.0, %v2025
        %v2027 = vtanh.pop %v2013
        %v2028 = vxor.u32 %v2014, 2147483648
        %v2029 = vmul.f32 %v2028, 1.442695
        %v2030 = vpow.pop %v2029
        %v2031 = vadd.f32 %v2030, 1.0
        %v2032 = vrcp.pop %v2031
        %v2033 = vmul.f32 1.0, %v2032
        %v2034 = vmul.f32 %v2026, %v1728
        %v2035 = vmul.f32 %v2020, %v2027
        %v2036 = vadd.f32 %v2034, %v2035
        %v2037 = vtanh.pop %v2036
        %v2038 = vmul.f32 %v2033, %v2037
        %v2039 = vpack.c.bf16 %v2038, %v2038
        %2040 = vst [vmem:[#allocation3 + $0xc] sm:$0xf] %v2039
        %v2041 = vld [vmem:[#allocation3] sm:$0xf]
        %v2042 = vld [vmem:[#allocation3 + $0x4] sm:$0xf]
        %v2043 = vld [vmem:[#allocation3 + $0x8] sm:$0xf]
        %v2044 = vld [vmem:[#allocation3 + $0xc] sm:$0xf]
        %v2045 = vld [vmem:[#allocation12] sm:$0xf]
        %v2046 = vld [vmem:[#allocation12 + $0x4] sm:$0xf]
        %v2047 = vld [vmem:[#allocation12 + $0x8] sm:$0xf]
        %v2048 = vld [vmem:[#allocation12 + $0xc] sm:$0xf]
        %v2049 = vld [vmem:[#allocation12 + $0x10] sm:$0xf]
        %v2050 = vld [vmem:[#allocation12 + $0x14] sm:$0xf]
        %v2051 = vld [vmem:[#allocation12 + $0x18] sm:$0xf]
        %v2052 = vld [vmem:[#allocation12 + $0x1c] sm:$0xf]
        %v2053 = vld [vmem:[#allocation12 + $0x20] sm:$0xf]
        %v2054 = vld [vmem:[#allocation12 + $0x24] sm:$0xf]
        %v2055 = vld [vmem:[#allocation12 + $0x28] sm:$0xf]
        %v2056 = vld [vmem:[#allocation12 + $0x2c] sm:$0xf]
        %v2057 = vld [vmem:[#allocation12 + $0x30] sm:$0xf]
        %v2058 = vld [vmem:[#allocation12 + $0x34] sm:$0xf]
        %v2059 = vld [vmem:[#allocation12 + $0x38] sm:$0xf]
        %v2060 = vld [vmem:[#allocation12 + $0x3c] sm:$0xf]
        %v2061 = vld [vmem:[%s5] sm:$0x1]
        %v2063 = vlaneseq
        %v2064 = vshrl.u32 %v2063, 7
        %v2065 = vsub.s32 0, %v2064
        %v2066 = vrot.slane %v2061, %v2065
        %v2072 = vunpack.c.l.b16 %v2041
        %v2073 = vunpack.c.l.b16 %v2042
        %v2074 = vunpack.c.l.b16 %v2043
        %v2075 = vunpack.c.l.b16 %v2044
        %v2076 = vpack.c.b16 %v2073, %v2072
        %v2077 = vpack.c.b16 %v2075, %v2074
        %v2096 = vunpack.c.l.b16 %v2045
        %v2097 = vunpack.c.l.b16 %v2046
        %v2098 = vunpack.c.l.b16 %v2047
        %v2099 = vunpack.c.l.b16 %v2048
        %v2100 = vunpack.c.l.b16 %v2049
        %v2101 = vunpack.c.l.b16 %v2050
        %v2102 = vunpack.c.l.b16 %v2051
        %v2103 = vunpack.c.l.b16 %v2052
        %v2104 = vunpack.c.l.b16 %v2053
        %v2105 = vunpack.c.l.b16 %v2054
        %v2106 = vunpack.c.l.b16 %v2055
        %v2107 = vunpack.c.l.b16 %v2056
        %v2108 = vunpack.c.l.b16 %v2057
        %v2109 = vunpack.c.l.b16 %v2058
        %v2110 = vunpack.c.l.b16 %v2059
        %v2111 = vunpack.c.l.b16 %v2060
        %v2112 = vpack.c.b16 %v2097, %v2096
        %v2113 = vpack.c.b16 %v2099, %v2098
        %v2114 = vpack.c.b16 %v2101, %v2100
        %v2115 = vpack.c.b16 %v2103, %v2102
        %v2116 = vpack.c.b16 %v2105, %v2104
        %v2117 = vpack.c.b16 %v2107, %v2106
        %v2118 = vpack.c.b16 %v2109, %v2108
        %v2119 = vpack.c.b16 %v2111, %v2110
        %2128 = vmatprep.subr.bf16.mxu0 0
        %2129 = vmatpush1.bf16.msra.mxu0 %v2119
        %2130 = vmatprep.subr.bf16.mxu0 0
        %2131 = vmatpush1.bf16.msra.mxu0 %v2118
        %2132 = vmatprep.subr.bf16.mxu0 0
        %2133 = vmatpush1.bf16.msra.mxu0 %v2117
        %2134 = vmatprep.subr.bf16.mxu0 0
        %2135 = vmatpush1.bf16.msra.mxu0 %v2116
        %2136 = vmatprep.subr.bf16.mxu0 0
        %2137 = vmatpush1.bf16.msra.mxu0 %v2115
        %2138 = vmatprep.subr.bf16.mxu0 0
        %2139 = vmatpush1.bf16.msra.mxu0 %v2114
        %2140 = vmatprep.subr.bf16.mxu0 0
        %2141 = vmatpush1.bf16.msra.mxu0 %v2113
        %2142 = vmatprep.subr.bf16.mxu0 0
        %2143 = vmatpush1.bf16.msra.mxu0 %v2112
        %2144 = vmatprep.subr.bf16.mxu0 0
        %2145 = vmatpush2.bf16.msra.mxu0 0
        %2146 = vmatprep.subr.bf16.mxu0 0
        %2147 = vmatpush2.bf16.msra.mxu0 0
        %2148 = vmatprep.subr.bf16.mxu0 0
        %2149 = vmatpush2.bf16.msra.mxu0 0
        %2150 = vmatprep.subr.bf16.mxu0 0
        %2151 = vmatpush2.bf16.msra.mxu0 0
        %2152 = vmatprep.subr.bf16.mxu0 0
        %2153 = vmatpush2.bf16.msra.mxu0 0
        %2154 = vmatprep.subr.bf16.mxu0 0
        %2155 = vmatpush2.bf16.msra.mxu0 0
        %2156 = vmatprep.subr.bf16.mxu0 0
        %2157 = vmatpush2.bf16.msra.mxu0 0
        %2158 = vmatprep.subr.bf16.mxu0 0
        %2159 = vmatpush2.bf16.msra.mxu0 0
        %2160 = vmatprep.mubr.bf16.mxu0 0
        %2161 = vmatmul.mubr.bf16.gmra.mxu0 %v2076
        %v2162 = vpop.f32.mrf.mxu0
        %v2163 = vadd.f32 %v2066, %v2162
        %v2164 = vpop.f32.mrf.mxu0
        %v2165 = vpop.f32.mrf.mxu0
        %v2166 = vadd.f32 %v2066, %v2165
        %v2167 = vpop.f32.mrf.mxu0
        %2168 = vmatprep.mubr.bf16.mxu0 0
        %2169 = vmatmul.mubr.bf16.gmra.mxu0 %v2077
        %v2170 = vpop.f32.mrf.mxu0
        %v2171 = vadd.f32 %v2066, %v2170
        %v2172 = vpop.f32.mrf.mxu0
        %v2173 = vpop.f32.mrf.mxu0
        %v2174 = vadd.f32 %v2066, %v2173
        %v2175 = vpop.f32.mrf.mxu0
        %2176 = vdwg.mxu0
        %2177 = vst [vmem:[%s438] sm:$0xff] %v2163
        %2178 = vst [vmem:[%s438 + $0x8] sm:$0xff] %v2166
        %2179 = vst [vmem:[%s438 + $0x10] sm:$0xff] %v2171
        %2180 = vst [vmem:[%s438 + $0x18] sm:$0xff] %v2174
        %2181 = vst [vmem:[#allocation16] sm:$0xff] %v2038
        %2182 = vst [vmem:[#allocation18] sm:$0xff] %v2036
        %s2183 = sand.u32 %s213, 1
        %s2184 = scalar_lea.sflag [#allocation6], %s2183
        %s2185 = sand.u32 %s213, 1
        %s2186 = smul.addr %s2185, 32
        %s2187 = scalar_lea.vmem [#allocation15], %s2186
        // Predicated region
        $region81: #{tpu_custom_call.1} parent=51 // pred_check
          %p2188 = pneg %p223
        $region82: #{tpu_custom_call.1} parent=51 // pred_check_branch
          %2190 = sbr.rel (%p2188) target = $region84
        $region83: #{tpu_custom_call.1} parent=51 // pred_region
          %s2191 = smul.u32 4, %s32
          %s2193 = ssub.s32 512, 512
          %2194 = vsyncadd %s2184, %s2193
          %s2195 = smul.addr %s2191, 128
          %s2196 = scalar_lea.hbm %s8, %s2195
          %s2197 = sshll.u32 %s2187, 4
          %s2198 = int_to_ptr.vmem [resolvable:$true] %s2197
          %2203 = dma.vmem_to_hbm [thread:$0]  %s2198, 512, %s2196, %s2184, 128, 128, 8
        $region84: #{tpu_custom_call.1} parent=51 // pred_fallthru
          _
        // Predicated region
        $region85: #{tpu_custom_call.1} parent=51 // pred_check
          %p2204 = pneg %p244
        $region86: #{tpu_custom_call.1} parent=51 // pred_check_branch
          %2206 = sbr.rel (%p2204) target = $region88
        $region87: #{tpu_custom_call.1} parent=51 // pred_region
          %s2208 = ssub.s32 128, 128
          %2209 = vsyncadd [#allocation17], %s2208
          %s2211 = sshll.u32 [#allocation16], 4
          %s2212 = int_to_ptr.vmem [resolvable:$true] %s2211
          %2214 = dma.vmem_to_hbm [thread:$0]  %s2212, 128, %s9, [#allocation17]
        $region88: #{tpu_custom_call.1} parent=51 // pred_fallthru
          _
        // Predicated region
        $region89: #{tpu_custom_call.1} parent=51 // pred_check
          %p2215 = pneg %p265
        $region90: #{tpu_custom_call.1} parent=51 // pred_check_branch
          %2217 = sbr.rel (%p2215) target = $region92
        $region91: #{tpu_custom_call.1} parent=51 // pred_region
          %s2219 = ssub.s32 128, 128
          %2220 = vsyncadd [#allocation17], %s2219
          %s2222 = sshll.u32 [#allocation18], 4
          %s2223 = int_to_ptr.vmem [resolvable:$true] %s2222
          %2225 = dma.vmem_to_hbm [thread:$0]  %s2223, 128, %s10, [#allocation17]
        $region92: #{tpu_custom_call.1} parent=51 // pred_fallthru
          _
        // Predicated region
        $region93: #{tpu_custom_call.1} parent=51 // pred_check
          %p2226 = pneg %p244
        $region94: #{tpu_custom_call.1} parent=51 // pred_check_branch
          %2228 = sbr.rel (%p2226) target = $region96
        $region95: #{tpu_custom_call.1} parent=51 // pred_region
          %2229 = dma.done [#allocation17], 128
        $region96: #{tpu_custom_call.1} parent=51 // pred_fallthru
          _
        // Predicated region
        $region97: #{tpu_custom_call.1} parent=51 // pred_check
          %p2230 = pneg %p265
        $region98: #{tpu_custom_call.1} parent=51 // pred_check_branch
          %2232 = sbr.rel (%p2230) target = $region100
        $region99: #{tpu_custom_call.1} parent=51 // pred_region
          %2233 = dma.done [#allocation17], 128
        $region100: #{tpu_custom_call.1} parent=51 // pred_fallthru
          _
      $region52: #{tpu_custom_call.1} parent=5 // pred_fallthru
        _
      %p2234 = scmp.le.s32.totalorder 2, %s27
      // Predicated region
      $region101: #{tpu_custom_call.1} parent=5 // pred_check
        %p2235 = pneg %p2234
      $region102: #{tpu_custom_call.1} parent=5 // pred_check_branch
        %2237 = sbr.rel (%p2235) target = $region104
      $region103: #{tpu_custom_call.1} parent=5 // pred_region
        %s2238 = ssub.s32 %s27, 2
        // Predicated region
        $region105: #{tpu_custom_call.1} parent=103 // pred_check
          %p2239 = pneg %p229
        $region106: #{tpu_custom_call.1} parent=103 // pred_check_branch
          %2241 = sbr.rel (%p2239) target = $region108
        $region107: #{tpu_custom_call.1} parent=103 // pred_region
          %s2242 = sand.u32 %s214, 1
          %s2243 = scalar_lea.sflag [#allocation6], %s2242
          %s2244 = sand.u32 %s214, 1
          %s2245 = smul.addr %s2244, 32
          %s2246 = scalar_lea.vmem [#allocation15], %s2245
          %2247 = dma.done %s2243, 512
        $region108: #{tpu_custom_call.1} parent=103 // pred_fallthru
          _
      $region104: #{tpu_custom_call.1} parent=5 // pred_fallthru
        _
    $region6: #{tpu_custom_call.1} parent=1 // loop_footer
      %s31 = sadd.s32 1, %s27
    $region7: #{tpu_custom_call.1} parent=1 // loop_footer_branch
      %26 = sbr.rel target = $region3
    $region8: #{tpu_custom_call.1} parent=1 // loop_exit
      _
    %2248 = vsyncpa [#allocation5], 1
    %s2249 = scalar_lea.sflag [#allocation5], 1
    %2250 = vsyncpa %s2249, 1
    %2251 = vsyncpa [#allocation8], 1
    %2252 = vsyncpa [#allocation11], 1
    %2253 = vsyncpa [#allocation14], 1
    %2254 = vsyncpa [#allocation6], 1
    %s2255 = scalar_lea.sflag [#allocation6], 1
    %2256 = vsyncpa %s2255, 1
    %2257 = vsyncpa [#allocation17], 1

</llo_original>
